<compile_context>
chip_gen: v5e
topology: v5e:2x2
jax: 0.10.0
libtpu: 0.0.40
codegen_flags: <defaults>
</compile_context>

<pallas_src>
import numpy as np
import jax
import jax.numpy as jnp
from jax.experimental import pallas as pl
from jax.experimental.pallas import tpu as pltpu


N = 128        # 1-D / 2-D FFT length
N_FFT = 64     # STFT frame length
HOP = 4        # STFT hop length


# -----------------------------------------------------------------------------
# Fused kernel: everything on the MXU, intermediates resident in VMEM.
#   fcols = [cos | -sin]          (128, 256) bf16   forward DFT, variable on the left
#   frows = [cos ; -sin]          (256, 128) bf16   forward/inverse DFT, const on the left
#   frinv = cos / N^2, fiinv = -sin / N^2  (128,128) bf16  scaled inverse (stage D)
#   stcomb = [window-folded fwd DFT ; (sw@ig)^T]    (256, 64) bf16
# -----------------------------------------------------------------------------
def _fused_kernel(x1_ref, x2_ref, frames_ref,
                  fcols_ref, frows_ref, frinv_ref, fiinv_ref, stcomb_ref,
                  y1_ref, z1_ref, y2_ref, z2_ref, st_ref):
    f32, bf16 = jnp.float32, jnp.bfloat16
    fcols = fcols_ref[...]                                     # (128, 256)
    frows = frows_ref[...]                                     # (256, 128)

    # ===== 2-D chain: rfft2 -> ifft(-2) -> irfft(-1) ========================
    # Stage A: FFT along the last dim.  xpack = [Xr | Xi]  (lane-packed).
    xpack = jnp.dot(x2_ref[...], fcols, preferred_element_type=f32)       # (128, 256)
    # Stage B: FFT along dim -2. One 256x256 dot gives all four partial products.
    bp = jnp.dot(frows, xpack.astype(bf16), preferred_element_type=f32)   # (256, 256)
    y2r = bp[:N, :N] - bp[N:, N:]
    y2i = bp[:N, N:] + bp[N:, :N]
    y2_ref[:, :N] = y2r
    y2_ref[:, N:] = y2i
    # Stage C: inverse FFT along dim -2 (1/N deferred into the stage-D bases).
    d1 = jnp.dot(frows, y2r.astype(bf16), preferred_element_type=f32)     # (256, 128)
    d2 = jnp.dot(frows, y2i.astype(bf16), preferred_element_type=f32)     # (256, 128)
    x2pr = d1[:N, :] + d2[N:, :]
    x2pi = d2[:N, :] - d1[N:, :]
    # Stage D: real part of inverse FFT along the last dim; 1/N^2 folded into bases.
    z2_ref[...] = (
        jnp.dot(x2pr.astype(bf16), frinv_ref[...], preferred_element_type=f32)
        + jnp.dot(x2pi.astype(bf16), fiinv_ref[...], preferred_element_type=f32))

    # ===== 1-D chain: rfft -> irfft (row 0 holds the data) ===================
    y1 = jnp.dot(x1_ref[...], fcols, preferred_element_type=f32)          # (8, 256)
    y1_ref[...] = y1
    # single-vreg (8,128) scale; cheaper than DMAing another scaled 64 KiB basis
    z1_ref[...] = jnp.dot(y1.astype(bf16), frows,
                          preferred_element_type=f32) * (1.0 / N)

    # ===== STFT + per-frame windowed inverse DFT (ISTFT frame stage) =========
    # One dot: rows 0..127 = [Sr ; Si] in (freq, frame) layout,
    #          rows 128..255 = [Rr ; Ri] windowed inverse frames in (pos, frame) layout.
    st_ref[...] = jnp.dot(stcomb_ref[...], frames_ref[...],
                          preferred_element_type=f32)                      # (256, 128)


def _vmem_specs(n):
    return [pl.BlockSpec(memory_space=pltpu.MemorySpace.VMEM)] * n


# -----------------------------------------------------------------------------
# Forward pass: thin JAX glue (basis construction, framing, output slicing,
# overlap-add).  All matmul work happens inside the single Pallas kernel.
# -----------------------------------------------------------------------------
def my_module_forward(x1d, x2d, window):
    f32, bf16 = jnp.float32, jnp.bfloat16
    K = N // 2 + 1                                          # 65 onesided bins

    x1 = x1d.astype(f32)                                    # (1, 128)
    x2 = x2d[0].astype(f32)                                 # (128, 128)

    # ---- input-independent 128-point DFT bases (constant-folded by XLA) ----
    r = jnp.arange(N, dtype=jnp.int32)
    ang = (2.0 * np.pi / N) * ((r[:, None] * r[None, :]) % N).astype(f32)
    fr = jnp.cos(ang)
    fi = -jnp.sin(ang)
    fcols = jnp.concatenate([fr, fi], axis=1).astype(bf16)          # (128, 256)
    frows = jnp.concatenate([fr, fi], axis=0).astype(bf16)          # (256, 128)
    frinv = (fr / (N * N)).astype(bf16)                             # (128, 128)
    fiinv = (fi / (N * N)).astype(bf16)                             # (128, 128)

    # ---- STFT framing (center=True, reflect pad) — tiny gather kept in glue ----
    pad = N_FFT // 2
    xp = jnp.pad(x1[0], (pad, pad), mode="reflect")                 # (192,)
    T = 1 + (xp.shape[0] - N_FFT) // HOP                            # 33 frames
    idx = jnp.arange(T)[:, None] * HOP + jnp.arange(N_FFT)[None, :]
    frames = xp[idx]                                                # (33, 64)
    frames_t = (jnp.zeros((N_FFT, 128), f32).at[:, :T]
                .set(frames.T).astype(bf16))                        # (64, 128)

    # ---- window-folded STFT / ISTFT operators (runtime window; tiny glue) ----
    k = jnp.arange(N_FFT, dtype=jnp.int32)
    angf = (2.0 * np.pi / N_FFT) * ((k[:, None] * k[None, :]) % N_FFT).astype(f32)
    c, s = jnp.cos(angf), jnp.sin(angf)
    w = window.astype(f32)
    stw = jnp.concatenate([w[None, :] * c, -(w[None, :] * s)], axis=0)   # (128, 64)
    sw = jnp.concatenate([w[:, None] * c, -(w[:, None] * s)], axis=1)    # (64, 128)
    b2r = (w[None, :] / N_FFT) * c
    b2i = (w[None, :] / N_FFT) * s
    ig = jnp.concatenate(
        [jnp.concatenate([b2r, b2i], axis=1),
         jnp.concatenate([-b2i, b2r], axis=1)], axis=0)                  # (128, 128)
    comb = sw @ ig                                                       # (64, 128)
    stcomb = jnp.concatenate([stw, comb.T], axis=0).astype(bf16)         # (256, 64)

    x1p = jnp.zeros((8, N), f32).at[0].set(x1[0]).astype(bf16)           # (8, 128)
    x2b = x2.astype(bf16)                                                # (128, 128)

    out_shapes = [
        jax.ShapeDtypeStruct((8, 2 * N), f32),     # y1: [Y1r | Y1i]
        jax.ShapeDtypeStruct((8, N), f32),         # z1
        jax.ShapeDtypeStruct((N, 2 * N), f32),     # y2: [Y2r | Y2i]
        jax.ShapeDtypeStruct((N, N), f32),         # z2
        jax.ShapeDtypeStruct((2 * N, N), f32),     # st: [Sr ; Si ; Rr^T ; Ri^T]
    ]
    y1o, z1o, y2o, z2o, sto = pl.pallas_call(
        _fused_kernel,
        out_shape=out_shapes,
        in_specs=_vmem_specs(8),
        out_specs=_vmem_specs(5),
    )(x1p, x2b, frames_t, fcols, frows, frinv, fiinv, stcomb)

    y1d = (y1o[0:1, :K] + 1j * y1o[0:1, N:N + K]).astype(jnp.complex64)        # (1, 65)
    z1d = z1o[0:1, :]                                                          # (1, 128)
    y2d = (y2o[:, :K] + 1j * y2o[:, N:N + K])[None].astype(jnp.complex64)      # (1,128,65)
    z2d = z2o[None]                                                            # (1,128,128)
    ys1d = (sto[:N_FFT, :T] + 1j * sto[N_FFT:2 * N_FFT, :T])[None].astype(jnp.complex64)

    # ---- overlap-add + window-envelope division (tiny skew-reshape, no scatter) ----
    out_len = N_FFT + HOP * (T - 1)                                            # 192
    rcplx = (sto[2 * N_FFT:3 * N_FFT, :T]
             + 1j * sto[3 * N_FFT:, :T]).T.astype(jnp.complex64)               # (33, 64)
    skew = jnp.pad(rcplx, ((0, 0), (0, out_len + HOP - N_FFT)))                # (33, 196)
    sig = skew.reshape(-1)[:T * out_len].reshape(T, out_len).sum(axis=0)       # (192,)
    m = jnp.arange(out_len)
    nidx = m[None, :] - HOP * jnp.arange(T)[:, None]                           # (33, 192)
    valid = (nidx >= 0) & (nidx < N_FFT)
    w2 = w * w
    env = jnp.sum(jnp.where(valid, w2[jnp.clip(nidx, 0, N_FFT - 1)], 0.0), axis=0)
    zs1d = (sig / env)[pad:pad + x1.shape[1]][None].astype(jnp.complex64)      # (1, 128)

    return y1d, z1d, y2d, z2d, ys1d, zs1d


if __name__ == "__main__":
    key = jax.random.PRNGKey(0)
    ka, kb, kc = jax.random.split(key, 3)
    x1d = jax.random.normal(ka, (1, 128), dtype=jnp.float32)
    x2d = jax.random.normal(kb, (1, 128, 128), dtype=jnp.float32)
    # torch.normal(0, 3, size=(64,)) analogue, generated deterministically.
    window = 3.0 * jax.random.normal(kc, (64,), dtype=jnp.float32)

    fwd = jax.jit(my_module_forward)
    outs = jax.block_until_ready(fwd(x1d, x2d, window))
    y1d, z1d, y2d, z2d, ys1d, zs1d = outs

    assert y1d.shape == (1, 65) and y1d.dtype == jnp.complex64
    assert z1d.shape == (1, 128) and z1d.dtype == jnp.float32
    assert y2d.shape == (1, 128, 65) and y2d.dtype == jnp.complex64
    assert z2d.shape == (1, 128, 128) and z2d.dtype == jnp.float32
    assert ys1d.shape == (1, 64, 33) and ys1d.dtype == jnp.complex64
    assert zs1d.shape == (1, 128) and zs1d.dtype == jnp.complex64

    # Round-trip sanity: irfft(rfft(x)) == x, irfft2(rfft2(x)) == x,
    # istft(stft(x)) == x (exact reconstruction with window-envelope division).
    err1 = float(jnp.max(jnp.abs(z1d - x1d)))
    err2 = float(jnp.max(jnp.abs(z2d - x2d)))
    err3 = float(jnp.max(jnp.abs(zs1d - x1d.astype(jnp.complex64))))
    assert err1 < 5e-2 and err2 < 5e-2 and err3 < 5e-2, (err1, err2, err3)

    print("KERNEL_OK")
</pallas_src>

<mosaic_0001>
module attributes {stable_mosaic.version = 11 : i64} {
  func.func @_fused_kernel(%arg0: memref<8x128xbf16, #tpu.memory_space<vmem>>, %arg1: memref<128x128xbf16, #tpu.memory_space<vmem>>, %arg2: memref<64x128xbf16, #tpu.memory_space<vmem>>, %arg3: memref<128x256xbf16, #tpu.memory_space<vmem>>, %arg4: memref<256x128xbf16, #tpu.memory_space<vmem>>, %arg5: memref<128x128xbf16, #tpu.memory_space<vmem>>, %arg6: memref<128x128xbf16, #tpu.memory_space<vmem>>, %arg7: memref<256x64xbf16, #tpu.memory_space<vmem>>, %arg8: memref<8x256xf32, #tpu.memory_space<vmem>>, %arg9: memref<8x128xf32, #tpu.memory_space<vmem>>, %arg10: memref<128x256xf32, #tpu.memory_space<vmem>>, %arg11: memref<128x128xf32, #tpu.memory_space<vmem>>, %arg12: memref<256x128xf32, #tpu.memory_space<vmem>>) attributes {dimension_semantics = [], scalar_prefetch = 0 : i64, scratch_operands = 0 : i64, tpu.core_type = #tpu.core_type<tc>} {
    %c0 = arith.constant 0 : index
    %c0_0 = arith.constant 0 : index
    %0 = vector.load %arg3[%c0, %c0_0] : memref<128x256xbf16, #tpu.memory_space<vmem>>, vector<128x256xbf16>
    %c0_1 = arith.constant 0 : index
    %c0_2 = arith.constant 0 : index
    %1 = vector.load %arg4[%c0_1, %c0_2] : memref<256x128xbf16, #tpu.memory_space<vmem>>, vector<256x128xbf16>
    %c0_3 = arith.constant 0 : index
    %c0_4 = arith.constant 0 : index
    %2 = vector.load %arg1[%c0_3, %c0_4] : memref<128x128xbf16, #tpu.memory_space<vmem>>, vector<128x128xbf16>
    %cst = arith.constant dense<0.000000e+00> : vector<128x256xf32>
    %3 = tpu.matmul %2, %0, %cst {dimension_numbers = #tpu.dot_dimension_numbers<[1], [0], [0], [1], [0, 0, 1, 1], [], []>} : vector<128x128xbf16>, vector<128x256xbf16>, vector<128x256xf32> -> vector<128x256xf32>
    %4 = arith.truncf %3 : vector<128x256xf32> to vector<128x256xbf16>
    %cst_5 = arith.constant dense<0.000000e+00> : vector<256x256xf32>
    %5 = tpu.matmul %1, %4, %cst_5 {dimension_numbers = #tpu.dot_dimension_numbers<[1], [0], [0], [1], [0, 0, 1, 1], [], []>} : vector<256x128xbf16>, vector<128x256xbf16>, vector<256x256xf32> -> vector<256x256xf32>
    %6 = vector.extract_strided_slice %5 {offsets = [0, 0], sizes = [128, 128], strides = [1, 1]} : vector<256x256xf32> to vector<128x128xf32>
    %7 = vector.extract_strided_slice %5 {offsets = [128, 128], sizes = [128, 128], strides = [1, 1]} : vector<256x256xf32> to vector<128x128xf32>
    %8 = arith.subf %6, %7 : vector<128x128xf32>
    %9 = vector.extract_strided_slice %5 {offsets = [0, 128], sizes = [128, 128], strides = [1, 1]} : vector<256x256xf32> to vector<128x128xf32>
    %10 = vector.extract_strided_slice %5 {offsets = [128, 0], sizes = [128, 128], strides = [1, 1]} : vector<256x256xf32> to vector<128x128xf32>
    %11 = arith.addf %9, %10 : vector<128x128xf32>
    %c0_6 = arith.constant 0 : index
    %c0_7 = arith.constant 0 : index
    %12 = vector.load %arg10[%c0_6, %c0_7] : memref<128x256xf32, #tpu.memory_space<vmem>>, vector<128x128xf32>
    tpu.vector_store %arg10[%c0_6, %c0_7], %8 {strides = array<i32>} : memref<128x256xf32, #tpu.memory_space<vmem>>, vector<128x128xf32>,
    %c0_8 = arith.constant 0 : index
    %c128 = arith.constant 128 : index
    %13 = vector.load %arg10[%c0_8, %c128] : memref<128x256xf32, #tpu.memory_space<vmem>>, vector<128x128xf32>
    tpu.vector_store %arg10[%c0_8, %c128], %11 {strides = array<i32>} : memref<128x256xf32, #tpu.memory_space<vmem>>, vector<128x128xf32>,
    %14 = arith.truncf %8 : vector<128x128xf32> to vector<128x128xbf16>
    %cst_9 = arith.constant dense<0.000000e+00> : vector<256x128xf32>
    %15 = tpu.matmul %1, %14, %cst_9 {dimension_numbers = #tpu.dot_dimension_numbers<[1], [0], [0], [1], [0, 0, 1, 1], [], []>} : vector<256x128xbf16>, vector<128x128xbf16>, vector<256x128xf32> -> vector<256x128xf32>
    %16 = arith.truncf %11 : vector<128x128xf32> to vector<128x128xbf16>
    %cst_10 = arith.constant dense<0.000000e+00> : vector<256x128xf32>
    %17 = tpu.matmul %1, %16, %cst_10 {dimension_numbers = #tpu.dot_dimension_numbers<[1], [0], [0], [1], [0, 0, 1, 1], [], []>} : vector<256x128xbf16>, vector<128x128xbf16>, vector<256x128xf32> -> vector<256x128xf32>
    %18 = vector.extract_strided_slice %15 {offsets = [0, 0], sizes = [128, 128], strides = [1, 1]} : vector<256x128xf32> to vector<128x128xf32>
    %19 = vector.extract_strided_slice %17 {offsets = [128, 0], sizes = [128, 128], strides = [1, 1]} : vector<256x128xf32> to vector<128x128xf32>
    %20 = arith.addf %18, %19 : vector<128x128xf32>
    %21 = vector.extract_strided_slice %17 {offsets = [0, 0], sizes = [128, 128], strides = [1, 1]} : vector<256x128xf32> to vector<128x128xf32>
    %22 = vector.extract_strided_slice %15 {offsets = [128, 0], sizes = [128, 128], strides = [1, 1]} : vector<256x128xf32> to vector<128x128xf32>
    %23 = arith.subf %21, %22 : vector<128x128xf32>
    %24 = arith.truncf %20 : vector<128x128xf32> to vector<128x128xbf16>
    %c0_11 = arith.constant 0 : index
    %c0_12 = arith.constant 0 : index
    %25 = vector.load %arg5[%c0_11, %c0_12] : memref<128x128xbf16, #tpu.memory_space<vmem>>, vector<128x128xbf16>
    %cst_13 = arith.constant dense<0.000000e+00> : vector<128x128xf32>
    %26 = tpu.matmul %24, %25, %cst_13 {dimension_numbers = #tpu.dot_dimension_numbers<[1], [0], [0], [1], [0, 0, 1, 1], [], []>} : vector<128x128xbf16>, vector<128x128xbf16>, vector<128x128xf32> -> vector<128x128xf32>
    %27 = arith.truncf %23 : vector<128x128xf32> to vector<128x128xbf16>
    %c0_14 = arith.constant 0 : index
    %c0_15 = arith.constant 0 : index
    %28 = vector.load %arg6[%c0_14, %c0_15] : memref<128x128xbf16, #tpu.memory_space<vmem>>, vector<128x128xbf16>
    %cst_16 = arith.constant dense<0.000000e+00> : vector<128x128xf32>
    %29 = tpu.matmul %27, %28, %cst_16 {dimension_numbers = #tpu.dot_dimension_numbers<[1], [0], [0], [1], [0, 0, 1, 1], [], []>} : vector<128x128xbf16>, vector<128x128xbf16>, vector<128x128xf32> -> vector<128x128xf32>
    %30 = arith.addf %26, %29 : vector<128x128xf32>
    %c0_17 = arith.constant 0 : index
    %c0_18 = arith.constant 0 : index
    %31 = vector.load %arg11[%c0_17, %c0_18] : memref<128x128xf32, #tpu.memory_space<vmem>>, vector<128x128xf32>
    tpu.vector_store %arg11[%c0_17, %c0_18], %30 {strides = array<i32>} : memref<128x128xf32, #tpu.memory_space<vmem>>, vector<128x128xf32>,
    %c0_19 = arith.constant 0 : index
    %c0_20 = arith.constant 0 : index
    %32 = vector.load %arg0[%c0_19, %c0_20] : memref<8x128xbf16, #tpu.memory_space<vmem>>, vector<8x128xbf16>
    %cst_21 = arith.constant dense<0.000000e+00> : vector<8x256xf32>
    %33 = tpu.matmul %32, %0, %cst_21 {dimension_numbers = #tpu.dot_dimension_numbers<[1], [0], [0], [1], [0, 0, 1, 1], [], []>} : vector<8x128xbf16>, vector<128x256xbf16>, vector<8x256xf32> -> vector<8x256xf32>
    %c0_22 = arith.constant 0 : index
    %c0_23 = arith.constant 0 : index
    %34 = vector.load %arg8[%c0_22, %c0_23] : memref<8x256xf32, #tpu.memory_space<vmem>>, vector<8x256xf32>
    tpu.vector_store %arg8[%c0_22, %c0_23], %33 {strides = array<i32>} : memref<8x256xf32, #tpu.memory_space<vmem>>, vector<8x256xf32>,
    %35 = arith.truncf %33 : vector<8x256xf32> to vector<8x256xbf16>
    %cst_24 = arith.constant dense<0.000000e+00> : vector<8x128xf32>
    %36 = tpu.matmul %35, %1, %cst_24 {dimension_numbers = #tpu.dot_dimension_numbers<[1], [0], [0], [1], [0, 0, 1, 1], [], []>} : vector<8x256xbf16>, vector<256x128xbf16>, vector<8x128xf32> -> vector<8x128xf32>
    %cst_25 = arith.constant 7.812500e-03 : f32
    %37 = vector.broadcast %cst_25 : f32 to vector<8x128xf32>
    %38 = arith.mulf %36, %37 : vector<8x128xf32>
    %c0_26 = arith.constant 0 : index
    %c0_27 = arith.constant 0 : index
    %39 = vector.load %arg9[%c0_26, %c0_27] : memref<8x128xf32, #tpu.memory_space<vmem>>, vector<8x128xf32>
    tpu.vector_store %arg9[%c0_26, %c0_27], %38 {strides = array<i32>} : memref<8x128xf32, #tpu.memory_space<vmem>>, vector<8x128xf32>,
    %c0_28 = arith.constant 0 : index
    %c0_29 = arith.constant 0 : index
    %40 = vector.load %arg7[%c0_28, %c0_29] : memref<256x64xbf16, #tpu.memory_space<vmem>>, vector<256x64xbf16>
    %c0_30 = arith.constant 0 : index
    %c0_31 = arith.constant 0 : index
    %41 = vector.load %arg2[%c0_30, %c0_31] : memref<64x128xbf16, #tpu.memory_space<vmem>>, vector<64x128xbf16>
    %cst_32 = arith.constant dense<0.000000e+00> : vector<256x128xf32>
    %42 = tpu.matmul %40, %41, %cst_32 {dimension_numbers = #tpu.dot_dimension_numbers<[1], [0], [0], [1], [0, 0, 1, 1], [], []>} : vector<256x64xbf16>, vector<64x128xbf16>, vector<256x128xf32> -> vector<256x128xf32>
    %c0_33 = arith.constant 0 : index
    %c0_34 = arith.constant 0 : index
    %43 = vector.load %arg12[%c0_33, %c0_34] : memref<256x128xf32, #tpu.memory_space<vmem>>, vector<256x128xf32>
    tpu.vector_store %arg12[%c0_33, %c0_34], %42 {strides = array<i32>} : memref<256x128xf32, #tpu.memory_space<vmem>>, vector<256x128xf32>,
    return
  }
}

</mosaic_0001>

<llo_original>
// kernel: custom-call
$region0: #{custom-call}
  %s0 = inlined_call_operand.vmem [shape: f32[1,65], index: 0, kind: input, shape index: {}]
  %s1 = inlined_call_operand.vmem [shape: f32[1,65], index: 1, kind: input, shape index: {}]
  %s2 = inlined_call_operand.hbm [shape: c64[1,65], index: 2, kind: output, shape index: {}]
  %s3 = scalar_lea.hbm %s2, 1
  $region1: #{custom-call} parent=0
    #allocation0 [shape = 's32[1]{0}', space=sflag, size = 0x4, scoped, tag = 'scoped memory for custom-call']
    %4 = vsyncpa [#allocation0], 0
    %s6 = sshll.u32 %s0, 4
    %s7 = int_to_ptr.vmem [resolvable:$true] %s6
    %s8 = sshll.u32 %s2, 4
    %s9 = int_to_ptr.hbm [resolvable:$true] %s8
    %11 = dma.vmem_to_hbm [thread:$0]  %s7, 16, %s9, [#allocation0]
    %13 = dma.done [#allocation0], 16
    %14 = vsyncpa [#allocation0], 1
  $region2: #{custom-call} parent=0
    #allocation1 [shape = 's32[1]{0}', space=sflag, size = 0x4, scoped, tag = 'scoped memory for custom-call']
    %15 = vsyncpa [#allocation1], 0
    %s17 = sshll.u32 %s1, 4
    %s18 = int_to_ptr.vmem [resolvable:$true] %s17
    %s19 = sshll.u32 %s3, 4
    %s20 = int_to_ptr.hbm [resolvable:$true] %s19
    %22 = dma.vmem_to_hbm [thread:$0]  %s18, 16, %s20, [#allocation1]
    %24 = dma.done [#allocation1], 16
    %25 = vsyncpa [#allocation1], 1

// kernel: custom-call.3
$region0: #{custom-call.3}
  %s0 = inlined_call_operand.vmem [shape: f32[1,128], index: 0, kind: input, shape index: {}]
  %s1 = inlined_call_operand.vmem [shape: f32[1,128], index: 1, kind: input, shape index: {}]
  %s2 = inlined_call_operand.hbm [shape: c64[1,128], index: 2, kind: output, shape index: {}]
  %s3 = scalar_lea.hbm %s2, 1
  $region1: #{custom-call.3} parent=0
    #allocation0 [shape = 's32[1]{0}', space=sflag, size = 0x4, scoped, tag = 'scoped memory for custom-call.3']
    %4 = vsyncpa [#allocation0], 0
    %s6 = sshll.u32 %s0, 4
    %s7 = int_to_ptr.vmem [resolvable:$true] %s6
    %s8 = sshll.u32 %s2, 4
    %s9 = int_to_ptr.hbm [resolvable:$true] %s8
    %11 = dma.vmem_to_hbm [thread:$0]  %s7, 16, %s9, [#allocation0]
    %13 = dma.done [#allocation0], 16
    %14 = vsyncpa [#allocation0], 1
  $region2: #{custom-call.3} parent=0
    #allocation1 [shape = 's32[1]{0}', space=sflag, size = 0x4, scoped, tag = 'scoped memory for custom-call.3']
    %15 = vsyncpa [#allocation1], 0
    %s17 = sshll.u32 %s1, 4
    %s18 = int_to_ptr.vmem [resolvable:$true] %s17
    %s19 = sshll.u32 %s3, 4
    %s20 = int_to_ptr.hbm [resolvable:$true] %s19
    %22 = dma.vmem_to_hbm [thread:$0]  %s18, 16, %s20, [#allocation1]
    %24 = dma.done [#allocation1], 16
    %25 = vsyncpa [#allocation1], 1

// kernel: custom-call.2
$region0: #{custom-call.2}
  %s0 = inlined_call_operand.vmem [shape: f32[1,64,33], index: 0, kind: input, shape index: {}]
  %s1 = inlined_call_operand.vmem [shape: f32[1,64,33], index: 1, kind: input, shape index: {}]
  %s2 = inlined_call_operand.vmem [shape: c64[1,64,33], index: 2, kind: output, shape index: {}]
  %s3 = scalar_lea.vmem %s2, 64
  %v4 = vld [vmem:[%s0] sm:$0xff]
  %5 = vst [vmem:[%s2] sm:$0xff] %v4
  %s6 = scalar_lea.vmem %s2, 8
  %s7 = scalar_lea.vmem %s0, 8
  %v8 = vld [vmem:[%s7] sm:$0xff]
  %9 = vst [vmem:[%s6] sm:$0xff] %v8
  %s10 = scalar_lea.vmem %s2, 16
  %s11 = scalar_lea.vmem %s0, 16
  %v12 = vld [vmem:[%s11] sm:$0xff]
  %13 = vst [vmem:[%s10] sm:$0xff] %v12
  %s14 = scalar_lea.vmem %s2, 24
  %s15 = scalar_lea.vmem %s0, 24
  %v16 = vld [vmem:[%s15] sm:$0xff]
  %17 = vst [vmem:[%s14] sm:$0xff] %v16
  %s18 = scalar_lea.vmem %s2, 32
  %s19 = scalar_lea.vmem %s0, 32
  %v20 = vld [vmem:[%s19] sm:$0xff]
  %21 = vst [vmem:[%s18] sm:$0xff] %v20
  %s22 = scalar_lea.vmem %s2, 40
  %s23 = scalar_lea.vmem %s0, 40
  %v24 = vld [vmem:[%s23] sm:$0xff]
  %25 = vst [vmem:[%s22] sm:$0xff] %v24
  %s26 = scalar_lea.vmem %s2, 48
  %s27 = scalar_lea.vmem %s0, 48
  %v28 = vld [vmem:[%s27] sm:$0xff]
  %29 = vst [vmem:[%s26] sm:$0xff] %v28
  %s30 = scalar_lea.vmem %s2, 56
  %s31 = scalar_lea.vmem %s0, 56
  %v32 = vld [vmem:[%s31] sm:$0xff]
  %33 = vst [vmem:[%s30] sm:$0xff] %v32
  %v34 = vld [vmem:[%s1] sm:$0xff]
  %35 = vst [vmem:[%s3] sm:$0xff] %v34
  %s36 = scalar_lea.vmem %s3, 8
  %s37 = scalar_lea.vmem %s1, 8
  %v38 = vld [vmem:[%s37] sm:$0xff]
  %39 = vst [vmem:[%s36] sm:$0xff] %v38
  %s40 = scalar_lea.vmem %s3, 16
  %s41 = scalar_lea.vmem %s1, 16
  %v42 = vld [vmem:[%s41] sm:$0xff]
  %43 = vst [vmem:[%s40] sm:$0xff] %v42
  %s44 = scalar_lea.vmem %s3, 24
  %s45 = scalar_lea.vmem %s1, 24
  %v46 = vld [vmem:[%s45] sm:$0xff]
  %47 = vst [vmem:[%s44] sm:$0xff] %v46
  %s48 = scalar_lea.vmem %s3, 32
  %s49 = scalar_lea.vmem %s1, 32
  %v50 = vld [vmem:[%s49] sm:$0xff]
  %51 = vst [vmem:[%s48] sm:$0xff] %v50
  %s52 = scalar_lea.vmem %s3, 40
  %s53 = scalar_lea.vmem %s1, 40
  %v54 = vld [vmem:[%s53] sm:$0xff]
  %55 = vst [vmem:[%s52] sm:$0xff] %v54
  %s56 = scalar_lea.vmem %s3, 48
  %s57 = scalar_lea.vmem %s1, 48
  %v58 = vld [vmem:[%s57] sm:$0xff]
  %59 = vst [vmem:[%s56] sm:$0xff] %v58
  %s60 = scalar_lea.vmem %s3, 56
  %s61 = scalar_lea.vmem %s1, 56
  %v62 = vld [vmem:[%s61] sm:$0xff]
  %63 = vst [vmem:[%s60] sm:$0xff] %v62

// kernel: custom-call.1
$region0: #{custom-call.1}
  %s0 = inlined_call_operand.vmem [shape: f32[1,128,65], index: 0, kind: input, shape index: {}]
  %s1 = inlined_call_operand.vmem [shape: f32[1,128,65], index: 1, kind: input, shape index: {}]
  %s2 = inlined_call_operand.vmem [shape: c64[1,128,65], index: 2, kind: output, shape index: {}]
  %s3 = scalar_lea.vmem %s2, 128
  %v4 = vld [vmem:[%s0] sm:$0xff]
  %5 = vst [vmem:[%s2] sm:$0xff] %v4
  %s6 = scalar_lea.vmem %s2, 8
  %s7 = scalar_lea.vmem %s0, 8
  %v8 = vld [vmem:[%s7] sm:$0xff]
  %9 = vst [vmem:[%s6] sm:$0xff] %v8
  %s10 = scalar_lea.vmem %s2, 16
  %s11 = scalar_lea.vmem %s0, 16
  %v12 = vld [vmem:[%s11] sm:$0xff]
  %13 = vst [vmem:[%s10] sm:$0xff] %v12
  %s14 = scalar_lea.vmem %s2, 24
  %s15 = scalar_lea.vmem %s0, 24
  %v16 = vld [vmem:[%s15] sm:$0xff]
  %17 = vst [vmem:[%s14] sm:$0xff] %v16
  %s18 = scalar_lea.vmem %s2, 32
  %s19 = scalar_lea.vmem %s0, 32
  %v20 = vld [vmem:[%s19] sm:$0xff]
  %21 = vst [vmem:[%s18] sm:$0xff] %v20
  %s22 = scalar_lea.vmem %s2, 40
  %s23 = scalar_lea.vmem %s0, 40
  %v24 = vld [vmem:[%s23] sm:$0xff]
  %25 = vst [vmem:[%s22] sm:$0xff] %v24
  %s26 = scalar_lea.vmem %s2, 48
  %s27 = scalar_lea.vmem %s0, 48
  %v28 = vld [vmem:[%s27] sm:$0xff]
  %29 = vst [vmem:[%s26] sm:$0xff] %v28
  %s30 = scalar_lea.vmem %s2, 56
  %s31 = scalar_lea.vmem %s0, 56
  %v32 = vld [vmem:[%s31] sm:$0xff]
  %33 = vst [vmem:[%s30] sm:$0xff] %v32
  %s34 = scalar_lea.vmem %s2, 64
  %s35 = scalar_lea.vmem %s0, 64
  %v36 = vld [vmem:[%s35] sm:$0xff]
  %37 = vst [vmem:[%s34] sm:$0xff] %v36
  %s38 = scalar_lea.vmem %s2, 72
  %s39 = scalar_lea.vmem %s0, 72
  %v40 = vld [vmem:[%s39] sm:$0xff]
  %41 = vst [vmem:[%s38] sm:$0xff] %v40
  %s42 = scalar_lea.vmem %s2, 80
  %s43 = scalar_lea.vmem %s0, 80
  %v44 = vld [vmem:[%s43] sm:$0xff]
  %45 = vst [vmem:[%s42] sm:$0xff] %v44
  %s46 = scalar_lea.vmem %s2, 88
  %s47 = scalar_lea.vmem %s0, 88
  %v48 = vld [vmem:[%s47] sm:$0xff]
  %49 = vst [vmem:[%s46] sm:$0xff] %v48
  %s50 = scalar_lea.vmem %s2, 96
  %s51 = scalar_lea.vmem %s0, 96
  %v52 = vld [vmem:[%s51] sm:$0xff]
  %53 = vst [vmem:[%s50] sm:$0xff] %v52
  %s54 = scalar_lea.vmem %s2, 104
  %s55 = scalar_lea.vmem %s0, 104
  %v56 = vld [vmem:[%s55] sm:$0xff]
  %57 = vst [vmem:[%s54] sm:$0xff] %v56
  %s58 = scalar_lea.vmem %s2, 112
  %s59 = scalar_lea.vmem %s0, 112
  %v60 = vld [vmem:[%s59] sm:$0xff]
  %61 = vst [vmem:[%s58] sm:$0xff] %v60
  %s62 = scalar_lea.vmem %s2, 120
  %s63 = scalar_lea.vmem %s0, 120
  %v64 = vld [vmem:[%s63] sm:$0xff]
  %65 = vst [vmem:[%s62] sm:$0xff] %v64
  %v66 = vld [vmem:[%s1] sm:$0xff]
  %67 = vst [vmem:[%s3] sm:$0xff] %v66
  %s68 = scalar_lea.vmem %s3, 8
  %s69 = scalar_lea.vmem %s1, 8
  %v70 = vld [vmem:[%s69] sm:$0xff]
  %71 = vst [vmem:[%s68] sm:$0xff] %v70
  %s72 = scalar_lea.vmem %s3, 16
  %s73 = scalar_lea.vmem %s1, 16
  %v74 = vld [vmem:[%s73] sm:$0xff]
  %75 = vst [vmem:[%s72] sm:$0xff] %v74
  %s76 = scalar_lea.vmem %s3, 24
  %s77 = scalar_lea.vmem %s1, 24
  %v78 = vld [vmem:[%s77] sm:$0xff]
  %79 = vst [vmem:[%s76] sm:$0xff] %v78
  %s80 = scalar_lea.vmem %s3, 32
  %s81 = scalar_lea.vmem %s1, 32
  %v82 = vld [vmem:[%s81] sm:$0xff]
  %83 = vst [vmem:[%s80] sm:$0xff] %v82
  %s84 = scalar_lea.vmem %s3, 40
  %s85 = scalar_lea.vmem %s1, 40
  %v86 = vld [vmem:[%s85] sm:$0xff]
  %87 = vst [vmem:[%s84] sm:$0xff] %v86
  %s88 = scalar_lea.vmem %s3, 48
  %s89 = scalar_lea.vmem %s1, 48
  %v90 = vld [vmem:[%s89] sm:$0xff]
  %91 = vst [vmem:[%s88] sm:$0xff] %v90
  %s92 = scalar_lea.vmem %s3, 56
  %s93 = scalar_lea.vmem %s1, 56
  %v94 = vld [vmem:[%s93] sm:$0xff]
  %95 = vst [vmem:[%s92] sm:$0xff] %v94
  %s96 = scalar_lea.vmem %s3, 64
  %s97 = scalar_lea.vmem %s1, 64
  %v98 = vld [vmem:[%s97] sm:$0xff]
  %99 = vst [vmem:[%s96] sm:$0xff] %v98
  %s100 = scalar_lea.vmem %s3, 72
  %s101 = scalar_lea.vmem %s1, 72
  %v102 = vld [vmem:[%s101] sm:$0xff]
  %103 = vst [vmem:[%s100] sm:$0xff] %v102
  %s104 = scalar_lea.vmem %s3, 80
  %s105 = scalar_lea.vmem %s1, 80
  %v106 = vld [vmem:[%s105] sm:$0xff]
  %107 = vst [vmem:[%s104] sm:$0xff] %v106
  %s108 = scalar_lea.vmem %s3, 88
  %s109 = scalar_lea.vmem %s1, 88
  %v110 = vld [vmem:[%s109] sm:$0xff]
  %111 = vst [vmem:[%s108] sm:$0xff] %v110
  %s112 = scalar_lea.vmem %s3, 96
  %s113 = scalar_lea.vmem %s1, 96
  %v114 = vld [vmem:[%s113] sm:$0xff]
  %115 = vst [vmem:[%s112] sm:$0xff] %v114
  %s116 = scalar_lea.vmem %s3, 104
  %s117 = scalar_lea.vmem %s1, 104
  %v118 = vld [vmem:[%s117] sm:$0xff]
  %119 = vst [vmem:[%s116] sm:$0xff] %v118
  %s120 = scalar_lea.vmem %s3, 112
  %s121 = scalar_lea.vmem %s1, 112
  %v122 = vld [vmem:[%s121] sm:$0xff]
  %123 = vst [vmem:[%s120] sm:$0xff] %v122
  %s124 = scalar_lea.vmem %s3, 120
  %s125 = scalar_lea.vmem %s1, 120
  %v126 = vld [vmem:[%s125] sm:$0xff]
  %127 = vst [vmem:[%s124] sm:$0xff] %v126

// kernel: my_module_forward.1
$region0: #{my_module_forward.1}
  #allocation0 [shape = 'u32[]', space=smem, size = 0x4, offset = 0x4, fixed_abs, tag = 'smem constant byte address 0x4 - core index']
  #allocation1 [shape = 'u32[72,128]{1,0:T(1,128)}', space=vmem, size = 0x9000, scoped, tag = 'internal scratch']
  %s0 = inlined_call_operand.vmem [shape: bf16[8,128], index: 0, kind: input, shape index: {}]
  %s1 = inlined_call_operand.vmem [shape: bf16[128,128], index: 1, kind: input, shape index: {}]
  %s2 = inlined_call_operand.vmem [shape: bf16[64,128], index: 2, kind: input, shape index: {}]
  %s3 = inlined_call_operand.vmem [shape: bf16[128,256], index: 3, kind: input, shape index: {}]
  %s4 = inlined_call_operand.vmem [shape: bf16[256,128], index: 4, kind: input, shape index: {}]
  %s5 = inlined_call_operand.vmem [shape: bf16[128,128], index: 5, kind: input, shape index: {}]
  %s6 = inlined_call_operand.vmem [shape: bf16[128,128], index: 6, kind: input, shape index: {}]
  %s7 = inlined_call_operand.vmem [shape: bf16[256,64], index: 7, kind: input, shape index: {}]
  %s8 = inlined_call_operand.vmem [shape: f32[8,256], index: 8, kind: output, shape index: {0}]
  %s9 = inlined_call_operand.vmem [shape: f32[8,128], index: 9, kind: output, shape index: {1}]
  %s10 = inlined_call_operand.vmem [shape: f32[128,256], index: 10, kind: output, shape index: {2}]
  %s11 = inlined_call_operand.hbm [shape: f32[128,128], index: 11, kind: output, shape index: {3}]
  %s12 = inlined_call_operand.vmem [shape: f32[256,128], index: 12, kind: output, shape index: {4}]
  %13 = xla_tuple %s8, %s9, %s10, %s11, %s12
  %s14 = sld [smem:[#allocation0]]
  $region74: #{my_module_forward.1} parent=0
    _
  %s16 = ssub.s32 1, %s14
  %s17 = scalar_select 0, %s16, %s14
  $region1: #{my_module_forward.1} parent=0
    #allocation2 [shape = 'u8[65536]{0}', space=vmem, size = 0x10000, scoped, tag = 'output window, operand 3, single buffered']
    #allocation3 [shape = 's32[1]{0}', space=sflag, size = 0x4, scoped, tag = 'scoped memory for my_module_forward.1']
    %18 = vsyncpa [#allocation3], 0
    // Predicated region
    $region2: #{my_module_forward.1} parent=1 // pred_check
      _
    $region3: #{my_module_forward.1} parent=1 // pred_check_branch
      %20 = sbr.rel (0) target = $region5
    $region4: #{my_module_forward.1} parent=1 // pred_region
      _
    $region5: #{my_module_forward.1} parent=1 // pred_fallthru
      _
    // Predicated region
    $region6: #{my_module_forward.1} parent=1 // pred_check
      _
    $region7: #{my_module_forward.1} parent=1 // pred_check_branch
      %22 = sbr.rel (0) target = $region9
    $region8: #{my_module_forward.1} parent=1 // pred_region
      _
    $region9: #{my_module_forward.1} parent=1 // pred_fallthru
      _
    // Predicated region
    $region10: #{my_module_forward.1} parent=1 // pred_check
      _
    $region11: #{my_module_forward.1} parent=1 // pred_check_branch
      %24 = sbr.rel (0) target = $region13
    $region12: #{my_module_forward.1} parent=1 // pred_region
      _
    $region13: #{my_module_forward.1} parent=1 // pred_fallthru
      _
    // Predicated region
    $region14: #{my_module_forward.1} parent=1 // pred_check
      _
    $region15: #{my_module_forward.1} parent=1 // pred_check_branch
      %26 = sbr.rel (0) target = $region17
    $region16: #{my_module_forward.1} parent=1 // pred_region
      _
    $region17: #{my_module_forward.1} parent=1 // pred_fallthru
      _
    // Predicated region
    $region18: #{my_module_forward.1} parent=1 // pred_check
      _
    $region19: #{my_module_forward.1} parent=1 // pred_check_branch
      %28 = sbr.rel (0) target = $region21
    $region20: #{my_module_forward.1} parent=1 // pred_region
      _
    $region21: #{my_module_forward.1} parent=1 // pred_fallthru
      _
    // Predicated region
    $region22: #{my_module_forward.1} parent=1 // pred_check
      _
    $region23: #{my_module_forward.1} parent=1 // pred_check_branch
      %30 = sbr.rel (0) target = $region25
    $region24: #{my_module_forward.1} parent=1 // pred_region
      _
    $region25: #{my_module_forward.1} parent=1 // pred_fallthru
      _
    // Predicated region
    $region26: #{my_module_forward.1} parent=1 // pred_check
      _
    $region27: #{my_module_forward.1} parent=1 // pred_check_branch
      %32 = sbr.rel (0) target = $region29
    $region28: #{my_module_forward.1} parent=1 // pred_region
      _
    $region29: #{my_module_forward.1} parent=1 // pred_fallthru
      _
    // Predicated region
    $region30: #{my_module_forward.1} parent=1 // pred_check
      _
    $region31: #{my_module_forward.1} parent=1 // pred_check_branch
      %34 = sbr.rel (0) target = $region33
    $region32: #{my_module_forward.1} parent=1 // pred_region
      _
    $region33: #{my_module_forward.1} parent=1 // pred_fallthru
      _
    %v36 = vld [vmem:[%s3] sm:$0xff]
    %v37 = vld [vmem:[%s3 + $0x8] sm:$0xff]
    %v38 = vld [vmem:[%s3 + $0x10] sm:$0xff]
    %v39 = vld [vmem:[%s3 + $0x18] sm:$0xff]
    %v40 = vld [vmem:[%s3 + $0x20] sm:$0xff]
    %v41 = vld [vmem:[%s3 + $0x28] sm:$0xff]
    %v42 = vld [vmem:[%s3 + $0x30] sm:$0xff]
    %v43 = vld [vmem:[%s3 + $0x38] sm:$0xff]
    %v44 = vld [vmem:[%s3 + $0x40] sm:$0xff]
    %v45 = vld [vmem:[%s3 + $0x48] sm:$0xff]
    %v46 = vld [vmem:[%s3 + $0x50] sm:$0xff]
    %v47 = vld [vmem:[%s3 + $0x58] sm:$0xff]
    %v48 = vld [vmem:[%s3 + $0x60] sm:$0xff]
    %v49 = vld [vmem:[%s3 + $0x68] sm:$0xff]
    %v50 = vld [vmem:[%s3 + $0x70] sm:$0xff]
    %v51 = vld [vmem:[%s3 + $0x78] sm:$0xff]
    %v52 = vld [vmem:[%s4] sm:$0xf]
    %v53 = vld [vmem:[%s4 + $0x4] sm:$0xf]
    %v54 = vld [vmem:[%s4 + $0x8] sm:$0xf]
    %v55 = vld [vmem:[%s4 + $0xc] sm:$0xf]
    %v56 = vld [vmem:[%s4 + $0x10] sm:$0xf]
    %v57 = vld [vmem:[%s4 + $0x14] sm:$0xf]
    %v58 = vld [vmem:[%s4 + $0x18] sm:$0xf]
    %v59 = vld [vmem:[%s4 + $0x1c] sm:$0xf]
    %v60 = vld [vmem:[%s4 + $0x20] sm:$0xf]
    %v61 = vld [vmem:[%s4 + $0x24] sm:$0xf]
    %v62 = vld [vmem:[%s4 + $0x28] sm:$0xf]
    %v63 = vld [vmem:[%s4 + $0x2c] sm:$0xf]
    %v64 = vld [vmem:[%s4 + $0x30] sm:$0xf]
    %v65 = vld [vmem:[%s4 + $0x34] sm:$0xf]
    %v66 = vld [vmem:[%s4 + $0x38] sm:$0xf]
    %v67 = vld [vmem:[%s4 + $0x3c] sm:$0xf]
    %v68 = vld [vmem:[%s4 + $0x40] sm:$0xf]
    %v69 = vld [vmem:[%s4 + $0x44] sm:$0xf]
    %v70 = vld [vmem:[%s4 + $0x48] sm:$0xf]
    %v71 = vld [vmem:[%s4 + $0x4c] sm:$0xf]
    %v72 = vld [vmem:[%s4 + $0x50] sm:$0xf]
    %v73 = vld [vmem:[%s4 + $0x54] sm:$0xf]
    %v74 = vld [vmem:[%s4 + $0x58] sm:$0xf]
    %v75 = vld [vmem:[%s4 + $0x5c] sm:$0xf]
    %v76 = vld [vmem:[%s4 + $0x60] sm:$0xf]
    %v77 = vld [vmem:[%s4 + $0x64] sm:$0xf]
    %v78 = vld [vmem:[%s4 + $0x68] sm:$0xf]
    %v79 = vld [vmem:[%s4 + $0x6c] sm:$0xf]
    %v80 = vld [vmem:[%s4 + $0x70] sm:$0xf]
    %v81 = vld [vmem:[%s4 + $0x74] sm:$0xf]
    %v82 = vld [vmem:[%s4 + $0x78] sm:$0xf]
    %v83 = vld [vmem:[%s4 + $0x7c] sm:$0xf]
    %v84 = vld [vmem:[%s1] sm:$0xf]
    %v85 = vld [vmem:[%s1 + $0x4] sm:$0xf]
    %v86 = vld [vmem:[%s1 + $0x8] sm:$0xf]
    %v87 = vld [vmem:[%s1 + $0xc] sm:$0xf]
    %v88 = vld [vmem:[%s1 + $0x10] sm:$0xf]
    %v89 = vld [vmem:[%s1 + $0x14] sm:$0xf]
    %v90 = vld [vmem:[%s1 + $0x18] sm:$0xf]
    %v91 = vld [vmem:[%s1 + $0x1c] sm:$0xf]
    %v92 = vld [vmem:[%s1 + $0x20] sm:$0xf]
    %v93 = vld [vmem:[%s1 + $0x24] sm:$0xf]
    %v94 = vld [vmem:[%s1 + $0x28] sm:$0xf]
    %v95 = vld [vmem:[%s1 + $0x2c] sm:$0xf]
    %v96 = vld [vmem:[%s1 + $0x30] sm:$0xf]
    %v97 = vld [vmem:[%s1 + $0x34] sm:$0xf]
    %v98 = vld [vmem:[%s1 + $0x38] sm:$0xf]
    %v99 = vld [vmem:[%s1 + $0x3c] sm:$0xf]
    %v116 = vunpack.c.l.b16 %v84
    %v117 = vunpack.c.l.b16 %v85
    %v118 = vunpack.c.l.b16 %v86
    %v119 = vunpack.c.l.b16 %v87
    %v120 = vunpack.c.l.b16 %v88
    %v121 = vunpack.c.l.b16 %v89
    %v122 = vunpack.c.l.b16 %v90
    %v123 = vunpack.c.l.b16 %v91
    %v124 = vunpack.c.l.b16 %v92
    %v125 = vunpack.c.l.b16 %v93
    %v126 = vunpack.c.l.b16 %v94
    %v127 = vunpack.c.l.b16 %v95
    %v128 = vunpack.c.l.b16 %v96
    %v129 = vunpack.c.l.b16 %v97
    %v130 = vunpack.c.l.b16 %v98
    %v131 = vunpack.c.l.b16 %v99
    %v132 = vpack.c.b16 %v117, %v116
    %v133 = vpack.c.b16 %v119, %v118
    %v134 = vpack.c.b16 %v121, %v120
    %v135 = vpack.c.b16 %v123, %v122
    %v136 = vpack.c.b16 %v125, %v124
    %v137 = vpack.c.b16 %v127, %v126
    %v138 = vpack.c.b16 %v129, %v128
    %v139 = vpack.c.b16 %v131, %v130
    %v164 = vunpack.c.l.b16 %v36
    %v165 = vunpack.c.h.b16 %v36
    %v166 = vunpack.c.l.b16 %v37
    %v167 = vunpack.c.h.b16 %v37
    %v168 = vunpack.c.l.b16 %v38
    %v169 = vunpack.c.h.b16 %v38
    %v170 = vunpack.c.l.b16 %v39
    %v171 = vunpack.c.h.b16 %v39
    %v172 = vunpack.c.l.b16 %v40
    %v173 = vunpack.c.h.b16 %v40
    %v174 = vunpack.c.l.b16 %v41
    %v175 = vunpack.c.h.b16 %v41
    %v176 = vunpack.c.l.b16 %v42
    %v177 = vunpack.c.h.b16 %v42
    %v178 = vunpack.c.l.b16 %v43
    %v179 = vunpack.c.h.b16 %v43
    %v180 = vunpack.c.l.b16 %v44
    %v181 = vunpack.c.h.b16 %v44
    %v182 = vunpack.c.l.b16 %v45
    %v183 = vunpack.c.h.b16 %v45
    %v184 = vunpack.c.l.b16 %v46
    %v185 = vunpack.c.h.b16 %v46
    %v186 = vunpack.c.l.b16 %v47
    %v187 = vunpack.c.h.b16 %v47
    %v188 = vunpack.c.l.b16 %v48
    %v189 = vunpack.c.h.b16 %v48
    %v190 = vunpack.c.l.b16 %v49
    %v191 = vunpack.c.h.b16 %v49
    %v192 = vunpack.c.l.b16 %v50
    %v193 = vunpack.c.h.b16 %v50
    %v194 = vunpack.c.l.b16 %v51
    %v195 = vunpack.c.h.b16 %v51
    %v196 = vpack.c.b16 %v166, %v164
    %v197 = vpack.c.b16 %v167, %v165
    %v198 = vpack.c.b16 %v170, %v168
    %v199 = vpack.c.b16 %v171, %v169
    %v200 = vpack.c.b16 %v174, %v172
    %v201 = vpack.c.b16 %v175, %v173
    %v202 = vpack.c.b16 %v178, %v176
    %v203 = vpack.c.b16 %v179, %v177
    %v204 = vpack.c.b16 %v182, %v180
    %v205 = vpack.c.b16 %v183, %v181
    %v206 = vpack.c.b16 %v186, %v184
    %v207 = vpack.c.b16 %v187, %v185
    %v208 = vpack.c.b16 %v190, %v188
    %v209 = vpack.c.b16 %v191, %v189
    %v210 = vpack.c.b16 %v194, %v192
    %v211 = vpack.c.b16 %v195, %v193
    %228 = vmatpush.bf16.msra.mxu0 %v210
    %229 = vmatpush.bf16.msra.mxu0 %v208
    %230 = vmatpush.bf16.msra.mxu0 %v206
    %231 = vmatpush.bf16.msra.mxu0 %v204
    %232 = vmatpush.bf16.msra.mxu0 %v202
    %233 = vmatpush.bf16.msra.mxu0 %v200
    %234 = vmatpush.bf16.msra.mxu0 %v198
    %235 = vmatpush.bf16.msra.mxu0 %v196
    %236 = vmatmul.bf16.gmra.mxu0 %v132
    %v237 = vpop.f32.mrf.mxu0
    %v238 = vadd.f32 0.0, %v237
    %v239 = vpop.f32.mrf.mxu0
    %v240 = vadd.f32 0.0, %v239
    %241 = vmatmul.bf16.gmra.mxu0 %v133
    %v242 = vpop.f32.mrf.mxu0
    %v243 = vadd.f32 0.0, %v242
    %v244 = vpop.f32.mrf.mxu0
    %v245 = vadd.f32 0.0, %v244
    %246 = vmatmul.bf16.gmra.mxu0 %v134
    %v247 = vpop.f32.mrf.mxu0
    %v248 = vadd.f32 0.0, %v247
    %v249 = vpop.f32.mrf.mxu0
    %v250 = vadd.f32 0.0, %v249
    %251 = vmatmul.bf16.gmra.mxu0 %v135
    %v252 = vpop.f32.mrf.mxu0
    %v253 = vadd.f32 0.0, %v252
    %v254 = vpop.f32.mrf.mxu0
    %v255 = vadd.f32 0.0, %v254
    %256 = vmatmul.bf16.gmra.mxu0 %v136
    %v257 = vpop.f32.mrf.mxu0
    %v258 = vadd.f32 0.0, %v257
    %v259 = vpop.f32.mrf.mxu0
    %v260 = vadd.f32 0.0, %v259
    %261 = vmatmul.bf16.gmra.mxu0 %v137
    %v262 = vpop.f32.mrf.mxu0
    %v263 = vadd.f32 0.0, %v262
    %v264 = vpop.f32.mrf.mxu0
    %v265 = vadd.f32 0.0, %v264
    %266 = vmatmul.bf16.gmra.mxu0 %v138
    %v267 = vpop.f32.mrf.mxu0
    %v268 = vadd.f32 0.0, %v267
    %v269 = vpop.f32.mrf.mxu0
    %v270 = vadd.f32 0.0, %v269
    %271 = vmatmul.bf16.gmra.mxu0 %v139
    %v272 = vpop.f32.mrf.mxu0
    %v273 = vadd.f32 0.0, %v272
    %v274 = vpop.f32.mrf.mxu0
    %v275 = vadd.f32 0.0, %v274
    %276 = vdwg.mxu0
    %277 = vmatpush.bf16.msra.mxu0 %v211
    %278 = vmatpush.bf16.msra.mxu0 %v209
    %279 = vmatpush.bf16.msra.mxu0 %v207
    %280 = vmatpush.bf16.msra.mxu0 %v205
    %281 = vmatpush.bf16.msra.mxu0 %v203
    %282 = vmatpush.bf16.msra.mxu0 %v201
    %283 = vmatpush.bf16.msra.mxu0 %v199
    %284 = vmatpush.bf16.msra.mxu0 %v197
    %285 = vmatmul.bf16.gmra.mxu0 %v132
    %v286 = vpop.f32.mrf.mxu0
    %v287 = vadd.f32 0.0, %v286
    %v288 = vpop.f32.mrf.mxu0
    %v289 = vadd.f32 0.0, %v288
    %290 = vmatmul.bf16.gmra.mxu0 %v133
    %v291 = vpop.f32.mrf.mxu0
    %v292 = vadd.f32 0.0, %v291
    %v293 = vpop.f32.mrf.mxu0
    %v294 = vadd.f32 0.0, %v293
    %295 = vmatmul.bf16.gmra.mxu0 %v134
    %v296 = vpop.f32.mrf.mxu0
    %v297 = vadd.f32 0.0, %v296
    %v298 = vpop.f32.mrf.mxu0
    %v299 = vadd.f32 0.0, %v298
    %300 = vmatmul.bf16.gmra.mxu0 %v135
    %v301 = vpop.f32.mrf.mxu0
    %v302 = vadd.f32 0.0, %v301
    %v303 = vpop.f32.mrf.mxu0
    %v304 = vadd.f32 0.0, %v303
    %305 = vmatmul.bf16.gmra.mxu0 %v136
    %v306 = vpop.f32.mrf.mxu0
    %v307 = vadd.f32 0.0, %v306
    %v308 = vpop.f32.mrf.mxu0
    %v309 = vadd.f32 0.0, %v308
    %310 = vmatmul.bf16.gmra.mxu0 %v137
    %v311 = vpop.f32.mrf.mxu0
    %v312 = vadd.f32 0.0, %v311
    %v313 = vpop.f32.mrf.mxu0
    %v314 = vadd.f32 0.0, %v313
    %315 = vmatmul.bf16.gmra.mxu0 %v138
    %v316 = vpop.f32.mrf.mxu0
    %v317 = vadd.f32 0.0, %v316
    %v318 = vpop.f32.mrf.mxu0
    %v319 = vadd.f32 0.0, %v318
    %320 = vmatmul.bf16.gmra.mxu0 %v139
    %v321 = vpop.f32.mrf.mxu0
    %v322 = vadd.f32 0.0, %v321
    %v323 = vpop.f32.mrf.mxu0
    %v324 = vadd.f32 0.0, %v323
    %325 = vdwg.mxu0
    %v326 = vpack.c.bf16 %v240, %v238
    %v327 = vpack.c.bf16 %v289, %v287
    %v328 = vpack.c.bf16 %v245, %v243
    %v329 = vpack.c.bf16 %v294, %v292
    %v330 = vpack.c.bf16 %v250, %v248
    %v331 = vpack.c.bf16 %v299, %v297
    %v332 = vpack.c.bf16 %v255, %v253
    %v333 = vpack.c.bf16 %v304, %v302
    %v334 = vpack.c.bf16 %v260, %v258
    %v335 = vpack.c.bf16 %v309, %v307
    %v336 = vpack.c.bf16 %v265, %v263
    %v337 = vpack.c.bf16 %v314, %v312
    %v338 = vpack.c.bf16 %v270, %v268
    %v339 = vpack.c.bf16 %v319, %v317
    %v340 = vpack.c.bf16 %v275, %v273
    %v341 = vpack.c.bf16 %v324, %v322
    %v374 = vunpack.c.l.b16 %v52
    %v375 = vunpack.c.l.b16 %v53
    %v376 = vunpack.c.l.b16 %v54
    %v377 = vunpack.c.l.b16 %v55
    %v378 = vunpack.c.l.b16 %v56
    %v379 = vunpack.c.l.b16 %v57
    %v380 = vunpack.c.l.b16 %v58
    %v381 = vunpack.c.l.b16 %v59
    %v382 = vunpack.c.l.b16 %v60
    %v383 = vunpack.c.l.b16 %v61
    %v384 = vunpack.c.l.b16 %v62
    %v385 = vunpack.c.l.b16 %v63
    %v386 = vunpack.c.l.b16 %v64
    %v387 = vunpack.c.l.b16 %v65
    %v388 = vunpack.c.l.b16 %v66
    %v389 = vunpack.c.l.b16 %v67
    %v390 = vunpack.c.l.b16 %v68
    %v391 = vunpack.c.l.b16 %v69
    %v392 = vunpack.c.l.b16 %v70
    %v393 = vunpack.c.l.b16 %v71
    %v394 = vunpack.c.l.b16 %v72
    %v395 = vunpack.c.l.b16 %v73
    %v396 = vunpack.c.l.b16 %v74
    %v397 = vunpack.c.l.b16 %v75
    %v398 = vunpack.c.l.b16 %v76
    %v399 = vunpack.c.l.b16 %v77
    %v400 = vunpack.c.l.b16 %v78
    %v401 = vunpack.c.l.b16 %v79
    %v402 = vunpack.c.l.b16 %v80
    %v403 = vunpack.c.l.b16 %v81
    %v404 = vunpack.c.l.b16 %v82
    %v405 = vunpack.c.l.b16 %v83
    %v406 = vpack.c.b16 %v375, %v374
    %v407 = vpack.c.b16 %v377, %v376
    %v408 = vpack.c.b16 %v379, %v378
    %v409 = vpack.c.b16 %v381, %v380
    %v410 = vpack.c.b16 %v383, %v382
    %v411 = vpack.c.b16 %v385, %v384
    %v412 = vpack.c.b16 %v387, %v386
    %v413 = vpack.c.b16 %v389, %v388
    %v414 = vpack.c.b16 %v391, %v390
    %v415 = vpack.c.b16 %v393, %v392
    %v416 = vpack.c.b16 %v395, %v394
    %v417 = vpack.c.b16 %v397, %v396
    %v418 = vpack.c.b16 %v399, %v398
    %v419 = vpack.c.b16 %v401, %v400
    %v420 = vpack.c.b16 %v403, %v402
    %v421 = vpack.c.b16 %v405, %v404
    %438 = vmatpush.bf16.msra.mxu0 %v340
    %439 = vmatpush.bf16.msra.mxu0 %v338
    %440 = vmatpush.bf16.msra.mxu0 %v336
    %441 = vmatpush.bf16.msra.mxu0 %v334
    %442 = vmatpush.bf16.msra.mxu0 %v332
    %443 = vmatpush.bf16.msra.mxu0 %v330
    %444 = vmatpush.bf16.msra.mxu0 %v328
    %445 = vmatpush.bf16.msra.mxu0 %v326
    %446 = vmatmul.bf16.gmra.mxu0 %v406
    %v447 = vpop.f32.mrf.mxu0
    %v448 = vadd.f32 0.0, %v447
    %v449 = vpop.f32.mrf.mxu0
    %v450 = vadd.f32 0.0, %v449
    %451 = vmatmul.bf16.gmra.mxu0 %v407
    %v452 = vpop.f32.mrf.mxu0
    %v453 = vadd.f32 0.0, %v452
    %v454 = vpop.f32.mrf.mxu0
    %v455 = vadd.f32 0.0, %v454
    %456 = vmatmul.bf16.gmra.mxu0 %v408
    %v457 = vpop.f32.mrf.mxu0
    %v458 = vadd.f32 0.0, %v457
    %v459 = vpop.f32.mrf.mxu0
    %v460 = vadd.f32 0.0, %v459
    %461 = vmatmul.bf16.gmra.mxu0 %v409
    %v462 = vpop.f32.mrf.mxu0
    %v463 = vadd.f32 0.0, %v462
    %v464 = vpop.f32.mrf.mxu0
    %v465 = vadd.f32 0.0, %v464
    %466 = vmatmul.bf16.gmra.mxu0 %v410
    %v467 = vpop.f32.mrf.mxu0
    %v468 = vadd.f32 0.0, %v467
    %v469 = vpop.f32.mrf.mxu0
    %v470 = vadd.f32 0.0, %v469
    %471 = vmatmul.bf16.gmra.mxu0 %v411
    %v472 = vpop.f32.mrf.mxu0
    %v473 = vadd.f32 0.0, %v472
    %v474 = vpop.f32.mrf.mxu0
    %v475 = vadd.f32 0.0, %v474
    %476 = vmatmul.bf16.gmra.mxu0 %v412
    %v477 = vpop.f32.mrf.mxu0
    %v478 = vadd.f32 0.0, %v477
    %v479 = vpop.f32.mrf.mxu0
    %v480 = vadd.f32 0.0, %v479
    %481 = vmatmul.bf16.gmra.mxu0 %v413
    %v482 = vpop.f32.mrf.mxu0
    %v483 = vadd.f32 0.0, %v482
    %v484 = vpop.f32.mrf.mxu0
    %v485 = vadd.f32 0.0, %v484
    %486 = vmatmul.bf16.gmra.mxu0 %v414
    %v487 = vpop.f32.mrf.mxu0
    %v488 = vadd.f32 0.0, %v487
    %v489 = vpop.f32.mrf.mxu0
    %v490 = vadd.f32 0.0, %v489
    %491 = vmatmul.bf16.gmra.mxu0 %v415
    %v492 = vpop.f32.mrf.mxu0
    %v493 = vadd.f32 0.0, %v492
    %v494 = vpop.f32.mrf.mxu0
    %v495 = vadd.f32 0.0, %v494
    %496 = vmatmul.bf16.gmra.mxu0 %v416
    %v497 = vpop.f32.mrf.mxu0
    %v498 = vadd.f32 0.0, %v497
    %v499 = vpop.f32.mrf.mxu0
    %v500 = vadd.f32 0.0, %v499
    %501 = vmatmul.bf16.gmra.mxu0 %v417
    %v502 = vpop.f32.mrf.mxu0
    %v503 = vadd.f32 0.0, %v502
    %v504 = vpop.f32.mrf.mxu0
    %v505 = vadd.f32 0.0, %v504
    %506 = vmatmul.bf16.gmra.mxu0 %v418
    %v507 = vpop.f32.mrf.mxu0
    %v508 = vadd.f32 0.0, %v507
    %v509 = vpop.f32.mrf.mxu0
    %v510 = vadd.f32 0.0, %v509
    %511 = vmatmul.bf16.gmra.mxu0 %v419
    %v512 = vpop.f32.mrf.mxu0
    %v513 = vadd.f32 0.0, %v512
    %v514 = vpop.f32.mrf.mxu0
    %v515 = vadd.f32 0.0, %v514
    %516 = vmatmul.bf16.gmra.mxu0 %v420
    %v517 = vpop.f32.mrf.mxu0
    %v518 = vadd.f32 0.0, %v517
    %v519 = vpop.f32.mrf.mxu0
    %v520 = vadd.f32 0.0, %v519
    %521 = vmatmul.bf16.gmra.mxu0 %v421
    %v522 = vpop.f32.mrf.mxu0
    %v523 = vadd.f32 0.0, %v522
    %v524 = vpop.f32.mrf.mxu0
    %v525 = vadd.f32 0.0, %v524
    %526 = vdwg.mxu0
    %527 = vmatpush.bf16.msra.mxu0 %v341
    %528 = vmatpush.bf16.msra.mxu0 %v339
    %529 = vmatpush.bf16.msra.mxu0 %v337
    %530 = vmatpush.bf16.msra.mxu0 %v335
    %531 = vmatpush.bf16.msra.mxu0 %v333
    %532 = vmatpush.bf16.msra.mxu0 %v331
    %533 = vmatpush.bf16.msra.mxu0 %v329
    %534 = vmatpush.bf16.msra.mxu0 %v327
    %535 = vmatmul.bf16.gmra.mxu0 %v406
    %v536 = vpop.f32.mrf.mxu0
    %v537 = vadd.f32 0.0, %v536
    %v538 = vpop.f32.mrf.mxu0
    %v539 = vadd.f32 0.0, %v538
    %540 = vmatmul.bf16.gmra.mxu0 %v407
    %v541 = vpop.f32.mrf.mxu0
    %v542 = vadd.f32 0.0, %v541
    %v543 = vpop.f32.mrf.mxu0
    %v544 = vadd.f32 0.0, %v543
    %545 = vmatmul.bf16.gmra.mxu0 %v408
    %v546 = vpop.f32.mrf.mxu0
    %v547 = vadd.f32 0.0, %v546
    %v548 = vpop.f32.mrf.mxu0
    %v549 = vadd.f32 0.0, %v548
    %550 = vmatmul.bf16.gmra.mxu0 %v409
    %v551 = vpop.f32.mrf.mxu0
    %v552 = vadd.f32 0.0, %v551
    %v553 = vpop.f32.mrf.mxu0
    %v554 = vadd.f32 0.0, %v553
    %555 = vmatmul.bf16.gmra.mxu0 %v410
    %v556 = vpop.f32.mrf.mxu0
    %v557 = vadd.f32 0.0, %v556
    %v558 = vpop.f32.mrf.mxu0
    %v559 = vadd.f32 0.0, %v558
    %560 = vmatmul.bf16.gmra.mxu0 %v411
    %v561 = vpop.f32.mrf.mxu0
    %v562 = vadd.f32 0.0, %v561
    %v563 = vpop.f32.mrf.mxu0
    %v564 = vadd.f32 0.0, %v563
    %565 = vmatmul.bf16.gmra.mxu0 %v412
    %v566 = vpop.f32.mrf.mxu0
    %v567 = vadd.f32 0.0, %v566
    %v568 = vpop.f32.mrf.mxu0
    %v569 = vadd.f32 0.0, %v568
    %570 = vmatmul.bf16.gmra.mxu0 %v413
    %v571 = vpop.f32.mrf.mxu0
    %v572 = vadd.f32 0.0, %v571
    %v573 = vpop.f32.mrf.mxu0
    %v574 = vadd.f32 0.0, %v573
    %575 = vmatmul.bf16.gmra.mxu0 %v414
    %v576 = vpop.f32.mrf.mxu0
    %v577 = vadd.f32 0.0, %v576
    %v578 = vpop.f32.mrf.mxu0
    %v579 = vadd.f32 0.0, %v578
    %580 = vmatmul.bf16.gmra.mxu0 %v415
    %v581 = vpop.f32.mrf.mxu0
    %v582 = vadd.f32 0.0, %v581
    %v583 = vpop.f32.mrf.mxu0
    %v584 = vadd.f32 0.0, %v583
    %585 = vmatmul.bf16.gmra.mxu0 %v416
    %v586 = vpop.f32.mrf.mxu0
    %v587 = vadd.f32 0.0, %v586
    %v588 = vpop.f32.mrf.mxu0
    %v589 = vadd.f32 0.0, %v588
    %590 = vmatmul.bf16.gmra.mxu0 %v417
    %v591 = vpop.f32.mrf.mxu0
    %v592 = vadd.f32 0.0, %v591
    %v593 = vpop.f32.mrf.mxu0
    %v594 = vadd.f32 0.0, %v593
    %595 = vmatmul.bf16.gmra.mxu0 %v418
    %v596 = vpop.f32.mrf.mxu0
    %v597 = vadd.f32 0.0, %v596
    %v598 = vpop.f32.mrf.mxu0
    %v599 = vadd.f32 0.0, %v598
    %600 = vmatmul.bf16.gmra.mxu0 %v419
    %v601 = vpop.f32.mrf.mxu0
    %v602 = vadd.f32 0.0, %v601
    %v603 = vpop.f32.mrf.mxu0
    %v604 = vadd.f32 0.0, %v603
    %605 = vmatmul.bf16.gmra.mxu0 %v420
    %v606 = vpop.f32.mrf.mxu0
    %v607 = vadd.f32 0.0, %v606
    %v608 = vpop.f32.mrf.mxu0
    %v609 = vadd.f32 0.0, %v608
    %610 = vmatmul.bf16.gmra.mxu0 %v421
    %v611 = vpop.f32.mrf.mxu0
    %v612 = vadd.f32 0.0, %v611
    %v613 = vpop.f32.mrf.mxu0
    %v614 = vadd.f32 0.0, %v613
    %615 = vdwg.mxu0
    %v616 = vsub.f32 %v448, %v577
    %v617 = vsub.f32 %v450, %v579
    %v618 = vsub.f32 %v453, %v582
    %v619 = vsub.f32 %v455, %v584
    %v620 = vsub.f32 %v458, %v587
    %v621 = vsub.f32 %v460, %v589
    %v622 = vsub.f32 %v463, %v592
    %v623 = vsub.f32 %v465, %v594
    %v624 = vsub.f32 %v468, %v597
    %v625 = vsub.f32 %v470, %v599
    %v626 = vsub.f32 %v473, %v602
    %v627 = vsub.f32 %v475, %v604
    %v628 = vsub.f32 %v478, %v607
    %v629 = vsub.f32 %v480, %v609
    %v630 = vsub.f32 %v483, %v612
    %v631 = vsub.f32 %v485, %v614
    %v632 = vadd.f32 %v537, %v488
    %v633 = vadd.f32 %v539, %v490
    %v634 = vadd.f32 %v542, %v493
    %v635 = vadd.f32 %v544, %v495
    %v636 = vadd.f32 %v547, %v498
    %v637 = vadd.f32 %v549, %v500
    %v638 = vadd.f32 %v552, %v503
    %v639 = vadd.f32 %v554, %v505
    %v640 = vadd.f32 %v557, %v508
    %v641 = vadd.f32 %v559, %v510
    %v642 = vadd.f32 %v562, %v513
    %v643 = vadd.f32 %v564, %v515
    %v644 = vadd.f32 %v567, %v518
    %v645 = vadd.f32 %v569, %v520
    %v646 = vadd.f32 %v572, %v523
    %v647 = vadd.f32 %v574, %v525
    %648 = vst [vmem:[%s10] sm:$0xff] %v616
    %649 = vst [vmem:[%s10 + $0x10] sm:$0xff] %v617
    %650 = vst [vmem:[%s10 + $0x20] sm:$0xff] %v618
    %651 = vst [vmem:[%s10 + $0x30] sm:$0xff] %v619
    %652 = vst [vmem:[%s10 + $0x40] sm:$0xff] %v620
    %653 = vst [vmem:[%s10 + $0x50] sm:$0xff] %v621
    %654 = vst [vmem:[%s10 + $0x60] sm:$0xff] %v622
    %655 = vst [vmem:[%s10 + $0x70] sm:$0xff] %v623
    %656 = vst [vmem:[%s10 + $0x80] sm:$0xff] %v624
    %657 = vst [vmem:[%s10 + $0x90] sm:$0xff] %v625
    %658 = vst [vmem:[%s10 + $0xa0] sm:$0xff] %v626
    %659 = vst [vmem:[%s10 + $0xb0] sm:$0xff] %v627
    %660 = vst [vmem:[%s10 + $0xc0] sm:$0xff] %v628
    %661 = vst [vmem:[%s10 + $0xd0] sm:$0xff] %v629
    %662 = vst [vmem:[%s10 + $0xe0] sm:$0xff] %v630
    %663 = vst [vmem:[%s10 + $0xf0] sm:$0xff] %v631
    %664 = vst [vmem:[%s10 + $0x8] sm:$0xff] %v632
    %665 = vst [vmem:[%s10 + $0x18] sm:$0xff] %v633
    %666 = vst [vmem:[%s10 + $0x28] sm:$0xff] %v634
    %667 = vst [vmem:[%s10 + $0x38] sm:$0xff] %v635
    %668 = vst [vmem:[%s10 + $0x48] sm:$0xff] %v636
    %669 = vst [vmem:[%s10 + $0x58] sm:$0xff] %v637
    %670 = vst [vmem:[%s10 + $0x68] sm:$0xff] %v638
    %671 = vst [vmem:[%s10 + $0x78] sm:$0xff] %v639
    %672 = vst [vmem:[%s10 + $0x88] sm:$0xff] %v640
    %673 = vst [vmem:[%s10 + $0x98] sm:$0xff] %v641
    %674 = vst [vmem:[%s10 + $0xa8] sm:$0xff] %v642
    %675 = vst [vmem:[%s10 + $0xb8] sm:$0xff] %v643
    %676 = vst [vmem:[%s10 + $0xc8] sm:$0xff] %v644
    %677 = vst [vmem:[%s10 + $0xd8] sm:$0xff] %v645
    %678 = vst [vmem:[%s10 + $0xe8] sm:$0xff] %v646
    %679 = vst [vmem:[%s10 + $0xf8] sm:$0xff] %v647
    %v680 = vpack.c.bf16 %v617, %v616
    %v681 = vpack.c.bf16 %v619, %v618
    %v682 = vpack.c.bf16 %v621, %v620
    %v683 = vpack.c.bf16 %v623, %v622
    %v684 = vpack.c.bf16 %v625, %v624
    %v685 = vpack.c.bf16 %v627, %v626
    %v686 = vpack.c.bf16 %v629, %v628
    %v687 = vpack.c.bf16 %v631, %v630
    %688 = vmatpush.bf16.msra.mxu0 %v687
    %689 = vmatpush.bf16.msra.mxu0 %v686
    %690 = vmatpush.bf16.msra.mxu0 %v685
    %691 = vmatpush.bf16.msra.mxu0 %v684
    %692 = vmatpush.bf16.msra.mxu0 %v683
    %693 = vmatpush.bf16.msra.mxu0 %v682
    %694 = vmatpush.bf16.msra.mxu0 %v681
    %695 = vmatpush.bf16.msra.mxu0 %v680
    %696 = vmatmul.bf16.gmra.mxu0 %v406
    %v697 = vpop.f32.mrf.mxu0
    %v698 = vadd.f32 0.0, %v697
    %v699 = vpop.f32.mrf.mxu0
    %v700 = vadd.f32 0.0, %v699
    %701 = vmatmul.bf16.gmra.mxu0 %v407
    %v702 = vpop.f32.mrf.mxu0
    %v703 = vadd.f32 0.0, %v702
    %v704 = vpop.f32.mrf.mxu0
    %v705 = vadd.f32 0.0, %v704
    %706 = vmatmul.bf16.gmra.mxu0 %v408
    %v707 = vpop.f32.mrf.mxu0
    %v708 = vadd.f32 0.0, %v707
    %v709 = vpop.f32.mrf.mxu0
    %v710 = vadd.f32 0.0, %v709
    %711 = vmatmul.bf16.gmra.mxu0 %v409
    %v712 = vpop.f32.mrf.mxu0
    %v713 = vadd.f32 0.0, %v712
    %v714 = vpop.f32.mrf.mxu0
    %v715 = vadd.f32 0.0, %v714
    %716 = vmatmul.bf16.gmra.mxu0 %v410
    %v717 = vpop.f32.mrf.mxu0
    %v718 = vadd.f32 0.0, %v717
    %v719 = vpop.f32.mrf.mxu0
    %v720 = vadd.f32 0.0, %v719
    %721 = vmatmul.bf16.gmra.mxu0 %v411
    %v722 = vpop.f32.mrf.mxu0
    %v723 = vadd.f32 0.0, %v722
    %v724 = vpop.f32.mrf.mxu0
    %v725 = vadd.f32 0.0, %v724
    %726 = vmatmul.bf16.gmra.mxu0 %v412
    %v727 = vpop.f32.mrf.mxu0
    %v728 = vadd.f32 0.0, %v727
    %v729 = vpop.f32.mrf.mxu0
    %v730 = vadd.f32 0.0, %v729
    %731 = vmatmul.bf16.gmra.mxu0 %v413
    %v732 = vpop.f32.mrf.mxu0
    %v733 = vadd.f32 0.0, %v732
    %v734 = vpop.f32.mrf.mxu0
    %v735 = vadd.f32 0.0, %v734
    %736 = vmatmul.bf16.gmra.mxu0 %v414
    %v737 = vpop.f32.mrf.mxu0
    %v738 = vadd.f32 0.0, %v737
    %v739 = vpop.f32.mrf.mxu0
    %v740 = vadd.f32 0.0, %v739
    %741 = vmatmul.bf16.gmra.mxu0 %v415
    %v742 = vpop.f32.mrf.mxu0
    %v743 = vadd.f32 0.0, %v742
    %v744 = vpop.f32.mrf.mxu0
    %v745 = vadd.f32 0.0, %v744
    %746 = vmatmul.bf16.gmra.mxu0 %v416
    %v747 = vpop.f32.mrf.mxu0
    %v748 = vadd.f32 0.0, %v747
    %v749 = vpop.f32.mrf.mxu0
    %v750 = vadd.f32 0.0, %v749
    %751 = vmatmul.bf16.gmra.mxu0 %v417
    %v752 = vpop.f32.mrf.mxu0
    %v753 = vadd.f32 0.0, %v752
    %v754 = vpop.f32.mrf.mxu0
    %v755 = vadd.f32 0.0, %v754
    %756 = vmatmul.bf16.gmra.mxu0 %v418
    %v757 = vpop.f32.mrf.mxu0
    %v758 = vadd.f32 0.0, %v757
    %v759 = vpop.f32.mrf.mxu0
    %v760 = vadd.f32 0.0, %v759
    %761 = vmatmul.bf16.gmra.mxu0 %v419
    %v762 = vpop.f32.mrf.mxu0
    %v763 = vadd.f32 0.0, %v762
    %v764 = vpop.f32.mrf.mxu0
    %v765 = vadd.f32 0.0, %v764
    %766 = vmatmul.bf16.gmra.mxu0 %v420
    %v767 = vpop.f32.mrf.mxu0
    %v768 = vadd.f32 0.0, %v767
    %v769 = vpop.f32.mrf.mxu0
    %v770 = vadd.f32 0.0, %v769
    %771 = vmatmul.bf16.gmra.mxu0 %v421
    %v772 = vpop.f32.mrf.mxu0
    %v773 = vadd.f32 0.0, %v772
    %v774 = vpop.f32.mrf.mxu0
    %v775 = vadd.f32 0.0, %v774
    %776 = vdwg.mxu0
    %v777 = vpack.c.bf16 %v633, %v632
    %v778 = vpack.c.bf16 %v635, %v634
    %v779 = vpack.c.bf16 %v637, %v636
    %v780 = vpack.c.bf16 %v639, %v638
    %v781 = vpack.c.bf16 %v641, %v640
    %v782 = vpack.c.bf16 %v643, %v642
    %v783 = vpack.c.bf16 %v645, %v644
    %v784 = vpack.c.bf16 %v647, %v646
    %785 = vmatpush.bf16.msra.mxu0 %v784
    %786 = vmatpush.bf16.msra.mxu0 %v783
    %787 = vmatpush.bf16.msra.mxu0 %v782
    %788 = vmatpush.bf16.msra.mxu0 %v781
    %789 = vmatpush.bf16.msra.mxu0 %v780
    %790 = vmatpush.bf16.msra.mxu0 %v779
    %791 = vmatpush.bf16.msra.mxu0 %v778
    %792 = vmatpush.bf16.msra.mxu0 %v777
    %793 = vmatmul.bf16.gmra.mxu0 %v406
    %v794 = vpop.f32.mrf.mxu0
    %v795 = vadd.f32 0.0, %v794
    %v796 = vpop.f32.mrf.mxu0
    %v797 = vadd.f32 0.0, %v796
    %798 = vmatmul.bf16.gmra.mxu0 %v407
    %v799 = vpop.f32.mrf.mxu0
    %v800 = vadd.f32 0.0, %v799
    %v801 = vpop.f32.mrf.mxu0
    %v802 = vadd.f32 0.0, %v801
    %803 = vmatmul.bf16.gmra.mxu0 %v408
    %v804 = vpop.f32.mrf.mxu0
    %v805 = vadd.f32 0.0, %v804
    %v806 = vpop.f32.mrf.mxu0
    %v807 = vadd.f32 0.0, %v806
    %808 = vmatmul.bf16.gmra.mxu0 %v409
    %v809 = vpop.f32.mrf.mxu0
    %v810 = vadd.f32 0.0, %v809
    %v811 = vpop.f32.mrf.mxu0
    %v812 = vadd.f32 0.0, %v811
    %813 = vmatmul.bf16.gmra.mxu0 %v410
    %v814 = vpop.f32.mrf.mxu0
    %v815 = vadd.f32 0.0, %v814
    %v816 = vpop.f32.mrf.mxu0
    %v817 = vadd.f32 0.0, %v816
    %818 = vmatmul.bf16.gmra.mxu0 %v411
    %v819 = vpop.f32.mrf.mxu0
    %v820 = vadd.f32 0.0, %v819
    %v821 = vpop.f32.mrf.mxu0
    %v822 = vadd.f32 0.0, %v821
    %823 = vmatmul.bf16.gmra.mxu0 %v412
    %v824 = vpop.f32.mrf.mxu0
    %v825 = vadd.f32 0.0, %v824
    %v826 = vpop.f32.mrf.mxu0
    %v827 = vadd.f32 0.0, %v826
    %828 = vmatmul.bf16.gmra.mxu0 %v413
    %v829 = vpop.f32.mrf.mxu0
    %v830 = vadd.f32 0.0, %v829
    %v831 = vpop.f32.mrf.mxu0
    %v832 = vadd.f32 0.0, %v831
    %833 = vmatmul.bf16.gmra.mxu0 %v414
    %v834 = vpop.f32.mrf.mxu0
    %v835 = vadd.f32 0.0, %v834
    %v836 = vpop.f32.mrf.mxu0
    %v837 = vadd.f32 0.0, %v836
    %838 = vmatmul.bf16.gmra.mxu0 %v415
    %v839 = vpop.f32.mrf.mxu0
    %v840 = vadd.f32 0.0, %v839
    %v841 = vpop.f32.mrf.mxu0
    %v842 = vadd.f32 0.0, %v841
    %843 = vmatmul.bf16.gmra.mxu0 %v416
    %v844 = vpop.f32.mrf.mxu0
    %v845 = vadd.f32 0.0, %v844
    %v846 = vpop.f32.mrf.mxu0
    %v847 = vadd.f32 0.0, %v846
    %848 = vmatmul.bf16.gmra.mxu0 %v417
    %v849 = vpop.f32.mrf.mxu0
    %v850 = vadd.f32 0.0, %v849
    %v851 = vpop.f32.mrf.mxu0
    %v852 = vadd.f32 0.0, %v851
    %853 = vmatmul.bf16.gmra.mxu0 %v418
    %v854 = vpop.f32.mrf.mxu0
    %v855 = vadd.f32 0.0, %v854
    %v856 = vpop.f32.mrf.mxu0
    %v857 = vadd.f32 0.0, %v856
    %858 = vmatmul.bf16.gmra.mxu0 %v419
    %v859 = vpop.f32.mrf.mxu0
    %v860 = vadd.f32 0.0, %v859
    %v861 = vpop.f32.mrf.mxu0
    %v862 = vadd.f32 0.0, %v861
    %863 = vmatmul.bf16.gmra.mxu0 %v420
    %v864 = vpop.f32.mrf.mxu0
    %v865 = vadd.f32 0.0, %v864
    %v866 = vpop.f32.mrf.mxu0
    %v867 = vadd.f32 0.0, %v866
    %868 = vmatmul.bf16.gmra.mxu0 %v421
    %v869 = vpop.f32.mrf.mxu0
    %v870 = vadd.f32 0.0, %v869
    %v871 = vpop.f32.mrf.mxu0
    %v872 = vadd.f32 0.0, %v871
    %873 = vdwg.mxu0
    %v874 = vadd.f32 %v698, %v835
    %v875 = vadd.f32 %v700, %v837
    %v876 = vadd.f32 %v703, %v840
    %v877 = vadd.f32 %v705, %v842
    %v878 = vadd.f32 %v708, %v845
    %v879 = vadd.f32 %v710, %v847
    %v880 = vadd.f32 %v713, %v850
    %v881 = vadd.f32 %v715, %v852
    %v882 = vadd.f32 %v718, %v855
    %v883 = vadd.f32 %v720, %v857
    %v884 = vadd.f32 %v723, %v860
    %v885 = vadd.f32 %v725, %v862
    %v886 = vadd.f32 %v728, %v865
    %v887 = vadd.f32 %v730, %v867
    %v888 = vadd.f32 %v733, %v870
    %v889 = vadd.f32 %v735, %v872
    %v890 = vsub.f32 %v795, %v738
    %v891 = vsub.f32 %v797, %v740
    %v892 = vsub.f32 %v800, %v743
    %v893 = vsub.f32 %v802, %v745
    %v894 = vsub.f32 %v805, %v748
    %v895 = vsub.f32 %v807, %v750
    %v896 = vsub.f32 %v810, %v753
    %v897 = vsub.f32 %v812, %v755
    %v898 = vsub.f32 %v815, %v758
    %v899 = vsub.f32 %v817, %v760
    %v900 = vsub.f32 %v820, %v763
    %v901 = vsub.f32 %v822, %v765
    %v902 = vsub.f32 %v825, %v768
    %v903 = vsub.f32 %v827, %v770
    %v904 = vsub.f32 %v830, %v773
    %v905 = vsub.f32 %v832, %v775
    %v906 = vpack.c.bf16 %v875, %v874
    %v907 = vpack.c.bf16 %v877, %v876
    %v908 = vpack.c.bf16 %v879, %v878
    %v909 = vpack.c.bf16 %v881, %v880
    %v910 = vpack.c.bf16 %v883, %v882
    %v911 = vpack.c.bf16 %v885, %v884
    %v912 = vpack.c.bf16 %v887, %v886
    %v913 = vpack.c.bf16 %v889, %v888
    %v914 = vld [vmem:[%s5] sm:$0xf]
    %v915 = vld [vmem:[%s5 + $0x4] sm:$0xf]
    %v916 = vld [vmem:[%s5 + $0x8] sm:$0xf]
    %v917 = vld [vmem:[%s5 + $0xc] sm:$0xf]
    %v918 = vld [vmem:[%s5 + $0x10] sm:$0xf]
    %v919 = vld [vmem:[%s5 + $0x14] sm:$0xf]
    %v920 = vld [vmem:[%s5 + $0x18] sm:$0xf]
    %v921 = vld [vmem:[%s5 + $0x1c] sm:$0xf]
    %v922 = vld [vmem:[%s5 + $0x20] sm:$0xf]
    %v923 = vld [vmem:[%s5 + $0x24] sm:$0xf]
    %v924 = vld [vmem:[%s5 + $0x28] sm:$0xf]
    %v925 = vld [vmem:[%s5 + $0x2c] sm:$0xf]
    %v926 = vld [vmem:[%s5 + $0x30] sm:$0xf]
    %v927 = vld [vmem:[%s5 + $0x34] sm:$0xf]
    %v928 = vld [vmem:[%s5 + $0x38] sm:$0xf]
    %v929 = vld [vmem:[%s5 + $0x3c] sm:$0xf]
    %v930 = vpack.c.bf16 %v891, %v890
    %v931 = vpack.c.bf16 %v893, %v892
    %v932 = vpack.c.bf16 %v895, %v894
    %v933 = vpack.c.bf16 %v897, %v896
    %v934 = vpack.c.bf16 %v899, %v898
    %v935 = vpack.c.bf16 %v901, %v900
    %v936 = vpack.c.bf16 %v903, %v902
    %v937 = vpack.c.bf16 %v905, %v904
    %v938 = vld [vmem:[%s6] sm:$0xf]
    %v939 = vld [vmem:[%s6 + $0x4] sm:$0xf]
    %v940 = vld [vmem:[%s6 + $0x8] sm:$0xf]
    %v941 = vld [vmem:[%s6 + $0xc] sm:$0xf]
    %v942 = vld [vmem:[%s6 + $0x10] sm:$0xf]
    %v943 = vld [vmem:[%s6 + $0x14] sm:$0xf]
    %v944 = vld [vmem:[%s6 + $0x18] sm:$0xf]
    %v945 = vld [vmem:[%s6 + $0x1c] sm:$0xf]
    %v946 = vld [vmem:[%s6 + $0x20] sm:$0xf]
    %v947 = vld [vmem:[%s6 + $0x24] sm:$0xf]
    %v948 = vld [vmem:[%s6 + $0x28] sm:$0xf]
    %v949 = vld [vmem:[%s6 + $0x2c] sm:$0xf]
    %v950 = vld [vmem:[%s6 + $0x30] sm:$0xf]
    %v951 = vld [vmem:[%s6 + $0x34] sm:$0xf]
    %v952 = vld [vmem:[%s6 + $0x38] sm:$0xf]
    %v953 = vld [vmem:[%s6 + $0x3c] sm:$0xf]
    %v970 = vunpack.c.l.b16 %v938
    %v971 = vunpack.c.l.b16 %v939
    %v972 = vunpack.c.l.b16 %v940
    %v973 = vunpack.c.l.b16 %v941
    %v974 = vunpack.c.l.b16 %v942
    %v975 = vunpack.c.l.b16 %v943
    %v976 = vunpack.c.l.b16 %v944
    %v977 = vunpack.c.l.b16 %v945
    %v978 = vunpack.c.l.b16 %v946
    %v979 = vunpack.c.l.b16 %v947
    %v980 = vunpack.c.l.b16 %v948
    %v981 = vunpack.c.l.b16 %v949
    %v982 = vunpack.c.l.b16 %v950
    %v983 = vunpack.c.l.b16 %v951
    %v984 = vunpack.c.l.b16 %v952
    %v985 = vunpack.c.l.b16 %v953
    %v986 = vpack.c.b16 %v971, %v970
    %v987 = vpack.c.b16 %v973, %v972
    %v988 = vpack.c.b16 %v975, %v974
    %v989 = vpack.c.b16 %v977, %v976
    %v990 = vpack.c.b16 %v979, %v978
    %v991 = vpack.c.b16 %v981, %v980
    %v992 = vpack.c.b16 %v983, %v982
    %v993 = vpack.c.b16 %v985, %v984
    %1002 = vmatpush.bf16.msra.mxu0 %v993
    %1003 = vmatpush.bf16.msra.mxu0 %v992
    %1004 = vmatpush.bf16.msra.mxu0 %v991
    %1005 = vmatpush.bf16.msra.mxu0 %v990
    %1006 = vmatpush.bf16.msra.mxu0 %v989
    %1007 = vmatpush.bf16.msra.mxu0 %v988
    %1008 = vmatpush.bf16.msra.mxu0 %v987
    %1009 = vmatpush.bf16.msra.mxu0 %v986
    %1010 = vmatmul.bf16.gmra.mxu0 %v930
    %v1011 = vpop.f32.mrf.mxu0
    %v1012 = vadd.f32 0.0, %v1011
    %v1013 = vpop.f32.mrf.mxu0
    %v1014 = vadd.f32 0.0, %v1013
    %1015 = vmatmul.bf16.gmra.mxu0 %v931
    %v1016 = vpop.f32.mrf.mxu0
    %v1017 = vadd.f32 0.0, %v1016
    %v1018 = vpop.f32.mrf.mxu0
    %v1019 = vadd.f32 0.0, %v1018
    %1020 = vmatmul.bf16.gmra.mxu0 %v932
    %v1021 = vpop.f32.mrf.mxu0
    %v1022 = vadd.f32 0.0, %v1021
    %v1023 = vpop.f32.mrf.mxu0
    %v1024 = vadd.f32 0.0, %v1023
    %1025 = vmatmul.bf16.gmra.mxu0 %v933
    %v1026 = vpop.f32.mrf.mxu0
    %v1027 = vadd.f32 0.0, %v1026
    %v1028 = vpop.f32.mrf.mxu0
    %v1029 = vadd.f32 0.0, %v1028
    %1030 = vmatmul.bf16.gmra.mxu0 %v934
    %v1031 = vpop.f32.mrf.mxu0
    %v1032 = vadd.f32 0.0, %v1031
    %v1033 = vpop.f32.mrf.mxu0
    %v1034 = vadd.f32 0.0, %v1033
    %1035 = vmatmul.bf16.gmra.mxu0 %v935
    %v1036 = vpop.f32.mrf.mxu0
    %v1037 = vadd.f32 0.0, %v1036
    %v1038 = vpop.f32.mrf.mxu0
    %v1039 = vadd.f32 0.0, %v1038
    %1040 = vmatmul.bf16.gmra.mxu0 %v936
    %v1041 = vpop.f32.mrf.mxu0
    %v1042 = vadd.f32 0.0, %v1041
    %v1043 = vpop.f32.mrf.mxu0
    %v1044 = vadd.f32 0.0, %v1043
    %1045 = vmatmul.bf16.gmra.mxu0 %v937
    %v1046 = vpop.f32.mrf.mxu0
    %v1047 = vadd.f32 0.0, %v1046
    %v1048 = vpop.f32.mrf.mxu0
    %v1049 = vadd.f32 0.0, %v1048
    %1050 = vdwg.mxu0
    %v1067 = vunpack.c.l.b16 %v914
    %v1068 = vunpack.c.l.b16 %v915
    %v1069 = vunpack.c.l.b16 %v916
    %v1070 = vunpack.c.l.b16 %v917
    %v1071 = vunpack.c.l.b16 %v918
    %v1072 = vunpack.c.l.b16 %v919
    %v1073 = vunpack.c.l.b16 %v920
    %v1074 = vunpack.c.l.b16 %v921
    %v1075 = vunpack.c.l.b16 %v922
    %v1076 = vunpack.c.l.b16 %v923
    %v1077 = vunpack.c.l.b16 %v924
    %v1078 = vunpack.c.l.b16 %v925
    %v1079 = vunpack.c.l.b16 %v926
    %v1080 = vunpack.c.l.b16 %v927
    %v1081 = vunpack.c.l.b16 %v928
    %v1082 = vunpack.c.l.b16 %v929
    %v1083 = vpack.c.b16 %v1068, %v1067
    %v1084 = vpack.c.b16 %v1070, %v1069
    %v1085 = vpack.c.b16 %v1072, %v1071
    %v1086 = vpack.c.b16 %v1074, %v1073
    %v1087 = vpack.c.b16 %v1076, %v1075
    %v1088 = vpack.c.b16 %v1078, %v1077
    %v1089 = vpack.c.b16 %v1080, %v1079
    %v1090 = vpack.c.b16 %v1082, %v1081
    %1099 = vmatpush.bf16.msra.mxu0 %v1090
    %1100 = vmatpush.bf16.msra.mxu0 %v1089
    %1101 = vmatpush.bf16.msra.mxu0 %v1088
    %1102 = vmatpush.bf16.msra.mxu0 %v1087
    %1103 = vmatpush.bf16.msra.mxu0 %v1086
    %1104 = vmatpush.bf16.msra.mxu0 %v1085
    %1105 = vmatpush.bf16.msra.mxu0 %v1084
    %1106 = vmatpush.bf16.msra.mxu0 %v1083
    %1107 = vmatmul.bf16.gmra.mxu0 %v906
    %v1108 = vpop.f32.mrf.mxu0
    %v1109 = vadd.f32 %v1012, %v1108
    %v1110 = vpop.f32.mrf.mxu0
    %v1111 = vadd.f32 %v1014, %v1110
    %1112 = vmatmul.bf16.gmra.mxu0 %v907
    %v1113 = vpop.f32.mrf.mxu0
    %v1114 = vadd.f32 %v1017, %v1113
    %v1115 = vpop.f32.mrf.mxu0
    %v1116 = vadd.f32 %v1019, %v1115
    %1117 = vmatmul.bf16.gmra.mxu0 %v908
    %v1118 = vpop.f32.mrf.mxu0
    %v1119 = vadd.f32 %v1022, %v1118
    %v1120 = vpop.f32.mrf.mxu0
    %v1121 = vadd.f32 %v1024, %v1120
    %1122 = vmatmul.bf16.gmra.mxu0 %v909
    %v1123 = vpop.f32.mrf.mxu0
    %v1124 = vadd.f32 %v1027, %v1123
    %v1125 = vpop.f32.mrf.mxu0
    %v1126 = vadd.f32 %v1029, %v1125
    %1127 = vmatmul.bf16.gmra.mxu0 %v910
    %v1128 = vpop.f32.mrf.mxu0
    %v1129 = vadd.f32 %v1032, %v1128
    %v1130 = vpop.f32.mrf.mxu0
    %v1131 = vadd.f32 %v1034, %v1130
    %1132 = vmatmul.bf16.gmra.mxu0 %v911
    %v1133 = vpop.f32.mrf.mxu0
    %v1134 = vadd.f32 %v1037, %v1133
    %v1135 = vpop.f32.mrf.mxu0
    %v1136 = vadd.f32 %v1039, %v1135
    %1137 = vmatmul.bf16.gmra.mxu0 %v912
    %v1138 = vpop.f32.mrf.mxu0
    %v1139 = vadd.f32 %v1042, %v1138
    %v1140 = vpop.f32.mrf.mxu0
    %v1141 = vadd.f32 %v1044, %v1140
    %1142 = vmatmul.bf16.gmra.mxu0 %v913
    %v1143 = vpop.f32.mrf.mxu0
    %v1144 = vadd.f32 %v1047, %v1143
    %v1145 = vpop.f32.mrf.mxu0
    %v1146 = vadd.f32 %v1049, %v1145
    %1147 = vdwg.mxu0
    %1148 = vst [vmem:[#allocation2] sm:$0xff] %v1109
    %1149 = vst [vmem:[#allocation2 + $0x8] sm:$0xff] %v1111
    %1150 = vst [vmem:[#allocation2 + $0x10] sm:$0xff] %v1114
    %1151 = vst [vmem:[#allocation2 + $0x18] sm:$0xff] %v1116
    %1152 = vst [vmem:[#allocation2 + $0x20] sm:$0xff] %v1119
    %1153 = vst [vmem:[#allocation2 + $0x28] sm:$0xff] %v1121
    %1154 = vst [vmem:[#allocation2 + $0x30] sm:$0xff] %v1124
    %1155 = vst [vmem:[#allocation2 + $0x38] sm:$0xff] %v1126
    %1156 = vst [vmem:[#allocation2 + $0x40] sm:$0xff] %v1129
    %1157 = vst [vmem:[#allocation2 + $0x48] sm:$0xff] %v1131
    %1158 = vst [vmem:[#allocation2 + $0x50] sm:$0xff] %v1134
    %1159 = vst [vmem:[#allocation2 + $0x58] sm:$0xff] %v1136
    %1160 = vst [vmem:[#allocation2 + $0x60] sm:$0xff] %v1139
    %1161 = vst [vmem:[#allocation2 + $0x68] sm:$0xff] %v1141
    %1162 = vst [vmem:[#allocation2 + $0x70] sm:$0xff] %v1144
    %1163 = vst [vmem:[#allocation2 + $0x78] sm:$0xff] %v1146
    %v1164 = vld [vmem:[%s0] sm:$0xf]
    %1165 = vmatpush.bf16.msra.mxu0 %v210
    %1166 = vmatpush.bf16.msra.mxu0 %v208
    %1167 = vmatpush.bf16.msra.mxu0 %v206
    %1168 = vmatpush.bf16.msra.mxu0 %v204
    %1169 = vmatpush.bf16.msra.mxu0 %v202
    %1170 = vmatpush.bf16.msra.mxu0 %v200
    %1171 = vmatpush.bf16.msra.mxu0 %v198
    %1172 = vmatpush.bf16.msra.mxu0 %v196
    %1173 = vmatmul.bf16.gmra.mxu0 %v1164
    %v1174 = vpop.f32.mrf.mxu0
    %v1175 = vadd.f32 0.0, %v1174
    %v1176 = vpop.f32.mrf.mxu0
    %1177 = vdwg.mxu0
    %1178 = vmatpush.bf16.msra.mxu0 %v211
    %1179 = vmatpush.bf16.msra.mxu0 %v209
    %1180 = vmatpush.bf16.msra.mxu0 %v207
    %1181 = vmatpush.bf16.msra.mxu0 %v205
    %1182 = vmatpush.bf16.msra.mxu0 %v203
    %1183 = vmatpush.bf16.msra.mxu0 %v201
    %1184 = vmatpush.bf16.msra.mxu0 %v199
    %1185 = vmatpush.bf16.msra.mxu0 %v197
    %1186 = vmatmul.bf16.gmra.mxu0 %v1164
    %v1187 = vpop.f32.mrf.mxu0
    %v1188 = vadd.f32 0.0, %v1187
    %v1189 = vpop.f32.mrf.mxu0
    %1190 = vdwg.mxu0
    %1191 = vst [vmem:[%s8] sm:$0xff] %v1175
    %1192 = vst [vmem:[%s8 + $0x8] sm:$0xff] %v1188
    %v1193 = vpack.c.bf16 %v1175, %v1175
    %v1194 = vpack.c.bf16 %v1188, %v1188
    %1195 = vmatpush.bf16.msra.mxu0 %v413
    %1196 = vmatpush.bf16.msra.mxu0 %v412
    %1197 = vmatpush.bf16.msra.mxu0 %v411
    %1198 = vmatpush.bf16.msra.mxu0 %v410
    %1199 = vmatpush.bf16.msra.mxu0 %v409
    %1200 = vmatpush.bf16.msra.mxu0 %v408
    %1201 = vmatpush.bf16.msra.mxu0 %v407
    %1202 = vmatpush.bf16.msra.mxu0 %v406
    %1203 = vmatmul.bf16.gmra.mxu0 %v1193
    %v1204 = vpop.f32.mrf.mxu0
    %v1205 = vadd.f32 0.0, %v1204
    %v1206 = vpop.f32.mrf.mxu0
    %1207 = vdwg.mxu0
    %1208 = vmatpush.bf16.msra.mxu0 %v421
    %1209 = vmatpush.bf16.msra.mxu0 %v420
    %1210 = vmatpush.bf16.msra.mxu0 %v419
    %1211 = vmatpush.bf16.msra.mxu0 %v418
    %1212 = vmatpush.bf16.msra.mxu0 %v417
    %1213 = vmatpush.bf16.msra.mxu0 %v416
    %1214 = vmatpush.bf16.msra.mxu0 %v415
    %1215 = vmatpush.bf16.msra.mxu0 %v414
    %1216 = vmatmul.bf16.gmra.mxu0 %v1194
    %v1217 = vpop.f32.mrf.mxu0
    %v1218 = vadd.f32 %v1205, %v1217
    %v1219 = vpop.f32.mrf.mxu0
    %1220 = vdwg.mxu0
    %v1221 = vmul.f32 %v1218, 0.0078125
    %1222 = vst [vmem:[%s9] sm:$0xff] %v1221
    %v1223 = vld [vmem:[%s7] sm:$0xf]
    %v1224 = vld [vmem:[%s7 + $0x4] sm:$0xf]
    %v1225 = vld [vmem:[%s7 + $0x8] sm:$0xf]
    %v1226 = vld [vmem:[%s7 + $0xc] sm:$0xf]
    %v1227 = vld [vmem:[%s7 + $0x10] sm:$0xf]
    %v1228 = vld [vmem:[%s7 + $0x14] sm:$0xf]
    %v1229 = vld [vmem:[%s7 + $0x18] sm:$0xf]
    %v1230 = vld [vmem:[%s7 + $0x1c] sm:$0xf]
    %v1231 = vld [vmem:[%s7 + $0x20] sm:$0xf]
    %v1232 = vld [vmem:[%s7 + $0x24] sm:$0xf]
    %v1233 = vld [vmem:[%s7 + $0x28] sm:$0xf]
    %v1234 = vld [vmem:[%s7 + $0x2c] sm:$0xf]
    %v1235 = vld [vmem:[%s7 + $0x30] sm:$0xf]
    %v1236 = vld [vmem:[%s7 + $0x34] sm:$0xf]
    %v1237 = vld [vmem:[%s7 + $0x38] sm:$0xf]
    %v1238 = vld [vmem:[%s7 + $0x3c] sm:$0xf]
    %v1239 = vld [vmem:[%s7 + $0x40] sm:$0xf]
    %v1240 = vld [vmem:[%s7 + $0x44] sm:$0xf]
    %v1241 = vld [vmem:[%s7 + $0x48] sm:$0xf]
    %v1242 = vld [vmem:[%s7 + $0x4c] sm:$0xf]
    %v1243 = vld [vmem:[%s7 + $0x50] sm:$0xf]
    %v1244 = vld [vmem:[%s7 + $0x54] sm:$0xf]
    %v1245 = vld [vmem:[%s7 + $0x58] sm:$0xf]
    %v1246 = vld [vmem:[%s7 + $0x5c] sm:$0xf]
    %v1247 = vld [vmem:[%s7 + $0x60] sm:$0xf]
    %v1248 = vld [vmem:[%s7 + $0x64] sm:$0xf]
    %v1249 = vld [vmem:[%s7 + $0x68] sm:$0xf]
    %v1250 = vld [vmem:[%s7 + $0x6c] sm:$0xf]
    %v1251 = vld [vmem:[%s7 + $0x70] sm:$0xf]
    %v1252 = vld [vmem:[%s7 + $0x74] sm:$0xf]
    %v1253 = vld [vmem:[%s7 + $0x78] sm:$0xf]
    %v1254 = vld [vmem:[%s7 + $0x7c] sm:$0xf]
    %v1255 = vld [vmem:[%s2] sm:$0xf]
    %v1256 = vld [vmem:[%s2 + $0x4] sm:$0xf]
    %v1257 = vld [vmem:[%s2 + $0x8] sm:$0xf]
    %v1258 = vld [vmem:[%s2 + $0xc] sm:$0xf]
    %v1259 = vld [vmem:[%s2 + $0x10] sm:$0xf]
    %v1260 = vld [vmem:[%s2 + $0x14] sm:$0xf]
    %v1261 = vld [vmem:[%s2 + $0x18] sm:$0xf]
    %v1262 = vld [vmem:[%s2 + $0x1c] sm:$0xf]
    %v1295 = vunpack.c.l.b16 %v1223
    %v1296 = vunpack.c.l.b16 %v1224
    %v1297 = vunpack.c.l.b16 %v1225
    %v1298 = vunpack.c.l.b16 %v1226
    %v1299 = vunpack.c.l.b16 %v1227
    %v1300 = vunpack.c.l.b16 %v1228
    %v1301 = vunpack.c.l.b16 %v1229
    %v1302 = vunpack.c.l.b16 %v1230
    %v1303 = vunpack.c.l.b16 %v1231
    %v1304 = vunpack.c.l.b16 %v1232
    %v1305 = vunpack.c.l.b16 %v1233
    %v1306 = vunpack.c.l.b16 %v1234
    %v1307 = vunpack.c.l.b16 %v1235
    %v1308 = vunpack.c.l.b16 %v1236
    %v1309 = vunpack.c.l.b16 %v1237
    %v1310 = vunpack.c.l.b16 %v1238
    %v1311 = vunpack.c.l.b16 %v1239
    %v1312 = vunpack.c.l.b16 %v1240
    %v1313 = vunpack.c.l.b16 %v1241
    %v1314 = vunpack.c.l.b16 %v1242
    %v1315 = vunpack.c.l.b16 %v1243
    %v1316 = vunpack.c.l.b16 %v1244
    %v1317 = vunpack.c.l.b16 %v1245
    %v1318 = vunpack.c.l.b16 %v1246
    %v1319 = vunpack.c.l.b16 %v1247
    %v1320 = vunpack.c.l.b16 %v1248
    %v1321 = vunpack.c.l.b16 %v1249
    %v1322 = vunpack.c.l.b16 %v1250
    %v1323 = vunpack.c.l.b16 %v1251
    %v1324 = vunpack.c.l.b16 %v1252
    %v1325 = vunpack.c.l.b16 %v1253
    %v1326 = vunpack.c.l.b16 %v1254
    %v1327 = vpack.c.b16 %v1296, %v1295
    %v1328 = vpack.c.b16 %v1298, %v1297
    %v1329 = vpack.c.b16 %v1300, %v1299
    %v1330 = vpack.c.b16 %v1302, %v1301
    %v1331 = vpack.c.b16 %v1304, %v1303
    %v1332 = vpack.c.b16 %v1306, %v1305
    %v1333 = vpack.c.b16 %v1308, %v1307
    %v1334 = vpack.c.b16 %v1310, %v1309
    %v1335 = vpack.c.b16 %v1312, %v1311
    %v1336 = vpack.c.b16 %v1314, %v1313
    %v1337 = vpack.c.b16 %v1316, %v1315
    %v1338 = vpack.c.b16 %v1318, %v1317
    %v1339 = vpack.c.b16 %v1320, %v1319
    %v1340 = vpack.c.b16 %v1322, %v1321
    %v1341 = vpack.c.b16 %v1324, %v1323
    %v1342 = vpack.c.b16 %v1326, %v1325
    %v1351 = vunpack.c.l.b16 %v1255
    %v1352 = vunpack.c.l.b16 %v1256
    %v1353 = vunpack.c.l.b16 %v1257
    %v1354 = vunpack.c.l.b16 %v1258
    %v1355 = vunpack.c.l.b16 %v1259
    %v1356 = vunpack.c.l.b16 %v1260
    %v1357 = vunpack.c.l.b16 %v1261
    %v1358 = vunpack.c.l.b16 %v1262
    %v1359 = vpack.c.b16 %v1352, %v1351
    %v1360 = vpack.c.b16 %v1354, %v1353
    %v1361 = vpack.c.b16 %v1356, %v1355
    %v1362 = vpack.c.b16 %v1358, %v1357
    %vm1367 = vcmask 523264
    %v1369 = vsel %vm1367, %v1327, 0
    %v1372 = vsel %vm1367, %v1328, 0
    %v1375 = vsel %vm1367, %v1329, 0
    %v1378 = vsel %vm1367, %v1330, 0
    %v1381 = vsel %vm1367, %v1331, 0
    %v1384 = vsel %vm1367, %v1332, 0
    %v1387 = vsel %vm1367, %v1333, 0
    %v1390 = vsel %vm1367, %v1334, 0
    %v1393 = vsel %vm1367, %v1335, 0
    %v1396 = vsel %vm1367, %v1336, 0
    %v1399 = vsel %vm1367, %v1337, 0
    %v1402 = vsel %vm1367, %v1338, 0
    %v1405 = vsel %vm1367, %v1339, 0
    %v1408 = vsel %vm1367, %v1340, 0
    %v1411 = vsel %vm1367, %v1341, 0
    %v1414 = vsel %vm1367, %v1342, 0
    %1416 = vmatpush.bf16.msra.mxu0 0
    %1417 = vmatpush.bf16.msra.mxu0 0
    %1418 = vmatpush.bf16.msra.mxu0 0
    %1419 = vmatpush.bf16.msra.mxu0 0
    %1420 = vmatpush.bf16.msra.mxu0 %v1362
    %1421 = vmatpush.bf16.msra.mxu0 %v1361
    %1422 = vmatpush.bf16.msra.mxu0 %v1360
    %1423 = vmatpush.bf16.msra.mxu0 %v1359
    %1424 = vmatmul.bf16.gmra.mxu0 %v1369
    %v1425 = vpop.f32.mrf.mxu0
    %v1426 = vadd.f32 0.0, %v1425
    %v1427 = vpop.f32.mrf.mxu0
    %v1428 = vadd.f32 0.0, %v1427
    %1429 = vmatmul.bf16.gmra.mxu0 %v1372
    %v1430 = vpop.f32.mrf.mxu0
    %v1431 = vadd.f32 0.0, %v1430
    %v1432 = vpop.f32.mrf.mxu0
    %v1433 = vadd.f32 0.0, %v1432
    %1434 = vmatmul.bf16.gmra.mxu0 %v1375
    %v1435 = vpop.f32.mrf.mxu0
    %v1436 = vadd.f32 0.0, %v1435
    %v1437 = vpop.f32.mrf.mxu0
    %v1438 = vadd.f32 0.0, %v1437
    %1439 = vmatmul.bf16.gmra.mxu0 %v1378
    %v1440 = vpop.f32.mrf.mxu0
    %v1441 = vadd.f32 0.0, %v1440
    %v1442 = vpop.f32.mrf.mxu0
    %v1443 = vadd.f32 0.0, %v1442
    %1444 = vmatmul.bf16.gmra.mxu0 %v1381
    %v1445 = vpop.f32.mrf.mxu0
    %v1446 = vadd.f32 0.0, %v1445
    %v1447 = vpop.f32.mrf.mxu0
    %v1448 = vadd.f32 0.0, %v1447
    %1449 = vmatmul.bf16.gmra.mxu0 %v1384
    %v1450 = vpop.f32.mrf.mxu0
    %v1451 = vadd.f32 0.0, %v1450
    %v1452 = vpop.f32.mrf.mxu0
    %v1453 = vadd.f32 0.0, %v1452
    %1454 = vmatmul.bf16.gmra.mxu0 %v1387
    %v1455 = vpop.f32.mrf.mxu0
    %v1456 = vadd.f32 0.0, %v1455
    %v1457 = vpop.f32.mrf.mxu0
    %v1458 = vadd.f32 0.0, %v1457
    %1459 = vmatmul.bf16.gmra.mxu0 %v1390
    %v1460 = vpop.f32.mrf.mxu0
    %v1461 = vadd.f32 0.0, %v1460
    %v1462 = vpop.f32.mrf.mxu0
    %v1463 = vadd.f32 0.0, %v1462
    %1464 = vmatmul.bf16.gmra.mxu0 %v1393
    %v1465 = vpop.f32.mrf.mxu0
    %v1466 = vadd.f32 0.0, %v1465
    %v1467 = vpop.f32.mrf.mxu0
    %v1468 = vadd.f32 0.0, %v1467
    %1469 = vmatmul.bf16.gmra.mxu0 %v1396
    %v1470 = vpop.f32.mrf.mxu0
    %v1471 = vadd.f32 0.0, %v1470
    %v1472 = vpop.f32.mrf.mxu0
    %v1473 = vadd.f32 0.0, %v1472
    %1474 = vmatmul.bf16.gmra.mxu0 %v1399
    %v1475 = vpop.f32.mrf.mxu0
    %v1476 = vadd.f32 0.0, %v1475
    %v1477 = vpop.f32.mrf.mxu0
    %v1478 = vadd.f32 0.0, %v1477
    %1479 = vmatmul.bf16.gmra.mxu0 %v1402
    %v1480 = vpop.f32.mrf.mxu0
    %v1481 = vadd.f32 0.0, %v1480
    %v1482 = vpop.f32.mrf.mxu0
    %v1483 = vadd.f32 0.0, %v1482
    %1484 = vmatmul.bf16.gmra.mxu0 %v1405
    %v1485 = vpop.f32.mrf.mxu0
    %v1486 = vadd.f32 0.0, %v1485
    %v1487 = vpop.f32.mrf.mxu0
    %v1488 = vadd.f32 0.0, %v1487
    %1489 = vmatmul.bf16.gmra.mxu0 %v1408
    %v1490 = vpop.f32.mrf.mxu0
    %v1491 = vadd.f32 0.0, %v1490
    %v1492 = vpop.f32.mrf.mxu0
    %v1493 = vadd.f32 0.0, %v1492
    %1494 = vmatmul.bf16.gmra.mxu0 %v1411
    %v1495 = vpop.f32.mrf.mxu0
    %v1496 = vadd.f32 0.0, %v1495
    %v1497 = vpop.f32.mrf.mxu0
    %v1498 = vadd.f32 0.0, %v1497
    %1499 = vmatmul.bf16.gmra.mxu0 %v1414
    %v1500 = vpop.f32.mrf.mxu0
    %v1501 = vadd.f32 0.0, %v1500
    %v1502 = vpop.f32.mrf.mxu0
    %v1503 = vadd.f32 0.0, %v1502
    %1504 = vdwg.mxu0
    %1505 = vst [vmem:[%s12] sm:$0xff] %v1426
    %1506 = vst [vmem:[%s12 + $0x8] sm:$0xff] %v1428
    %1507 = vst [vmem:[%s12 + $0x10] sm:$0xff] %v1431
    %1508 = vst [vmem:[%s12 + $0x18] sm:$0xff] %v1433
    %1509 = vst [vmem:[%s12 + $0x20] sm:$0xff] %v1436
    %1510 = vst [vmem:[%s12 + $0x28] sm:$0xff] %v1438
    %1511 = vst [vmem:[%s12 + $0x30] sm:$0xff] %v1441
    %1512 = vst [vmem:[%s12 + $0x38] sm:$0xff] %v1443
    %1513 = vst [vmem:[%s12 + $0x40] sm:$0xff] %v1446
    %1514 = vst [vmem:[%s12 + $0x48] sm:$0xff] %v1448
    %1515 = vst [vmem:[%s12 + $0x50] sm:$0xff] %v1451
    %1516 = vst [vmem:[%s12 + $0x58] sm:$0xff] %v1453
    %1517 = vst [vmem:[%s12 + $0x60] sm:$0xff] %v1456
    %1518 = vst [vmem:[%s12 + $0x68] sm:$0xff] %v1458
    %1519 = vst [vmem:[%s12 + $0x70] sm:$0xff] %v1461
    %1520 = vst [vmem:[%s12 + $0x78] sm:$0xff] %v1463
    %1521 = vst [vmem:[%s12 + $0x80] sm:$0xff] %v1466
    %1522 = vst [vmem:[%s12 + $0x88] sm:$0xff] %v1468
    %1523 = vst [vmem:[%s12 + $0x90] sm:$0xff] %v1471
    %1524 = vst [vmem:[%s12 + $0x98] sm:$0xff] %v1473
    %1525 = vst [vmem:[%s12 + $0xa0] sm:$0xff] %v1476
    %1526 = vst [vmem:[%s12 + $0xa8] sm:$0xff] %v1478
    %1527 = vst [vmem:[%s12 + $0xb0] sm:$0xff] %v1481
    %1528 = vst [vmem:[%s12 + $0xb8] sm:$0xff] %v1483
    %1529 = vst [vmem:[%s12 + $0xc0] sm:$0xff] %v1486
    %1530 = vst [vmem:[%s12 + $0xc8] sm:$0xff] %v1488
    %1531 = vst [vmem:[%s12 + $0xd0] sm:$0xff] %v1491
    %1532 = vst [vmem:[%s12 + $0xd8] sm:$0xff] %v1493
    %1533 = vst [vmem:[%s12 + $0xe0] sm:$0xff] %v1496
    %1534 = vst [vmem:[%s12 + $0xe8] sm:$0xff] %v1498
    %1535 = vst [vmem:[%s12 + $0xf0] sm:$0xff] %v1501
    %1536 = vst [vmem:[%s12 + $0xf8] sm:$0xff] %v1503
    // Predicated region
    $region34: #{my_module_forward.1} parent=1 // pred_check
      _
    $region35: #{my_module_forward.1} parent=1 // pred_check_branch
      %1538 = sbr.rel (0) target = $region37
    $region36: #{my_module_forward.1} parent=1 // pred_region
      _
    $region37: #{my_module_forward.1} parent=1 // pred_fallthru
      _
    // Predicated region
    $region38: #{my_module_forward.1} parent=1 // pred_check
      _
    $region39: #{my_module_forward.1} parent=1 // pred_check_branch
      %1540 = sbr.rel (0) target = $region41
    $region40: #{my_module_forward.1} parent=1 // pred_region
      _
    $region41: #{my_module_forward.1} parent=1 // pred_fallthru
      _
    // Predicated region
    $region42: #{my_module_forward.1} parent=1 // pred_check
      _
    $region43: #{my_module_forward.1} parent=1 // pred_check_branch
      %1542 = sbr.rel (0) target = $region45
    $region44: #{my_module_forward.1} parent=1 // pred_region
      _
    $region45: #{my_module_forward.1} parent=1 // pred_fallthru
      _
    // Predicated region
    $region46: #{my_module_forward.1} parent=1 // pred_check
      _
    $region47: #{my_module_forward.1} parent=1 // pred_check_branch
      %1544 = sbr.rel (0) target = $region49
    $region48: #{my_module_forward.1} parent=1 // pred_region
      %1546 = vsyncadd [#allocation3], 0
      %s1547 = sshll.u32 [#allocation2], 4
      %s1548 = int_to_ptr.vmem [resolvable:$true] %s1547
      %s1549 = sshll.u32 %s11, 4
      %s1550 = int_to_ptr.hbm [resolvable:$true] %s1549
      %1555 = dma.vmem_to_hbm [thread:$0]  %s1548, 2048, %s1550, [#allocation3], 128, 128, 8
    $region49: #{my_module_forward.1} parent=1 // pred_fallthru
      _
    // Predicated region
    $region50: #{my_module_forward.1} parent=1 // pred_check
      _
    $region51: #{my_module_forward.1} parent=1 // pred_check_branch
      %1557 = sbr.rel (0) target = $region53
    $region52: #{my_module_forward.1} parent=1 // pred_region
      _
    $region53: #{my_module_forward.1} parent=1 // pred_fallthru
      _
    // Predicated region
    $region54: #{my_module_forward.1} parent=1 // pred_check
      _
    $region55: #{my_module_forward.1} parent=1 // pred_check_branch
      %1559 = sbr.rel (0) target = $region57
    $region56: #{my_module_forward.1} parent=1 // pred_region
      _
    $region57: #{my_module_forward.1} parent=1 // pred_fallthru
      _
    // Predicated region
    $region58: #{my_module_forward.1} parent=1 // pred_check
      _
    $region59: #{my_module_forward.1} parent=1 // pred_check_branch
      %1561 = sbr.rel (0) target = $region61
    $region60: #{my_module_forward.1} parent=1 // pred_region
      _
    $region61: #{my_module_forward.1} parent=1 // pred_fallthru
      _
    // Predicated region
    $region62: #{my_module_forward.1} parent=1 // pred_check
      _
    $region63: #{my_module_forward.1} parent=1 // pred_check_branch
      %1563 = sbr.rel (0) target = $region65
    $region64: #{my_module_forward.1} parent=1 // pred_region
      _
    $region65: #{my_module_forward.1} parent=1 // pred_fallthru
      _
    // Predicated region
    $region66: #{my_module_forward.1} parent=1 // pred_check
      _
    $region67: #{my_module_forward.1} parent=1 // pred_check_branch
      %1565 = sbr.rel (0) target = $region69
    $region68: #{my_module_forward.1} parent=1 // pred_region
      %1567 = dma.done [#allocation3], 2048
    $region69: #{my_module_forward.1} parent=1 // pred_fallthru
      _
    // Predicated region
    $region70: #{my_module_forward.1} parent=1 // pred_check
      _
    $region71: #{my_module_forward.1} parent=1 // pred_check_branch
      %1569 = sbr.rel (0) target = $region73
    $region72: #{my_module_forward.1} parent=1 // pred_region
      _
    $region73: #{my_module_forward.1} parent=1 // pred_fallthru
      _
    %1570 = vsyncpa [#allocation3], 1

</llo_original>
